<compile_context>
chip_gen: v7x
topology: tpu7x:2x2x1
jax: 0.10.0
libtpu: 0.0.40
codegen_flags: <defaults>
</compile_context>

<pallas_src>
import functools

import jax
import jax.numpy as jnp
from jax import lax
from jax.experimental import pallas as pl
from jax.experimental.pallas import tpu as pltpu


def _spatial_attention_kernel(w_ref, b_ref, idx_ref, x_ref, o_ref, *, H, W, KS, Nb):
    # w_ref:   SMEM (2*KS*KS,) f32  flattened conv weight (1/C folded into chan 0),
    #                               idx = c*KS*KS + kh*KS + kw
    # b_ref:   SMEM (1,) f32        conv bias
    # idx_ref: VMEM (2, H*W) i32    [row index, col index] of each flat spatial pos
    # x_ref:   VMEM (Nb, C, H*W)    lane-dense slab of Nb batch elements
    # o_ref:   VMEM (Nb, C, H*W)
    HW = H * W
    P = KS // 2

    x = x_ref[...]                                        # (Nb, C, HW), native dtype
    # Channel statistics on the lane-dense view (axis=1 is a sublane reduce).
    # 1/C is folded into the avg-channel conv weights -> plain f32 sum here.
    s = jnp.sum(x, axis=1, dtype=jnp.float32)             # (Nb, HW) f32
    mx = jnp.max(x, axis=1).astype(jnp.float32)           # (Nb, HW) max is exact

    row = idx_ref[0:1, :]                                 # (1, HW) int32
    col = idx_ref[1:2, :]                                 # (1, HW) int32

    # Hoisted boundary masks: each computed ONCE, reused for both channels.
    col_valid = {}
    row_valid = {}
    for t in range(KS):
        d = t - P
        if d > 0:
            col_valid[d] = col < (W - d)
            row_valid[d] = row < (H - d)
        elif d < 0:
            col_valid[d] = col >= (-d)
            row_valid[d] = row >= (-d)

    # 7x7 "SAME" conv over the 2-channel [avg, max] stack as 18 XLU rolls.
    # kw outermost: roll sum/max once per kw (masked taps shared by all kh),
    # accumulate weighted taps into KS per-kh accumulators, then a single row
    # roll per kh.  Minimizes live (Nb,HW) f32 temporaries (vreg pressure).
    kh_acc = [None] * KS
    for kw in range(KS):
        d = kw - P
        taps = []
        for base in (s, mx):
            if d == 0:
                taps.append(base)
            else:
                rolled = pltpu.roll(base, shift=(-d) % HW, axis=1)     # XLU
                taps.append(jnp.where(col_valid[d], rolled, 0.0))
        for kh in range(KS):
            contrib = (w_ref[0 * KS * KS + kh * KS + kw] * taps[0]
                       + w_ref[1 * KS * KS + kh * KS + kw] * taps[1])
            kh_acc[kh] = contrib if kh_acc[kh] is None else kh_acc[kh] + contrib

    acc = jnp.full((Nb, HW), b_ref[0], dtype=jnp.float32)
    for kh in range(KS):
        e = kh - P
        if e == 0:
            acc = acc + kh_acc[kh]
        else:
            rolled = pltpu.roll(kh_acc[kh], shift=(-(e * W)) % HW, axis=1)
            acc = acc + jnp.where(row_valid[e], rolled, 0.0)

    attn = jax.nn.sigmoid(acc)                            # (Nb, HW) f32, EUP

    # Gating in x's native dtype (bf16 stays bf16 on v6e/v7x), lane-dense store.
    o_ref[...] = (x * attn.astype(x.dtype)[:, None, :]).astype(o_ref.dtype)


def spatial_attention(x, weight, bias, *, batch_block=None):
    """x: (N, C, H, W); weight: (1, 2, KS, KS); bias: (1,). Returns (N, C, H, W)."""
    N, C, H, W = x.shape
    KS = weight.shape[-1]
    assert KS % 2 == 1, "SAME-style padding=KS//2 assumes an odd kernel size"
    HW = H * W

    itemsize = jnp.dtype(x.dtype).itemsize
    per_batch_io = C * HW * itemsize           # one batch element of x (== one of out)
    per_batch_tmp = 12 * HW * 4                # ~12 live (Nb,HW) f32 conv temporaries

    # Hardware-aware VMEM budget (v7x: 64 MiB physical per TC; v5e/v6e: 128 MiB).
    try:
        vmem_cap = int(pltpu.get_tpu_info().vmem_capacity_bytes)
    except Exception:
        vmem_cap = 64 * 1024 * 1024
    vmem_budget = int(0.75 * vmem_cap)

    # Per-step slab target: bigger slabs amortize the ~0.35us/step pipeline
    # overhead; keep it smaller on 64 MiB-VMEM parts (v7x).
    target_block = 8 * 1024 * 1024 if vmem_cap >= 96 * 1024 * 1024 else 4 * 1024 * 1024

    if batch_block is None:
        # Largest Nb such that (a) double-buffered in+out blocks plus the conv
        # temporaries fit the VMEM budget, (b) the slab stays near the target,
        # (c) the grid keeps >= 2 steps so v7x can shard across both TCs.
        max_nb_for_grid = max(1, -(-N // 2)) if N >= 2 else 1   # ceil(N/2)
        Nb = 1
        for nb in range(1, N + 1):
            fits_vmem = (4 * nb * per_batch_io + nb * per_batch_tmp
                         + (2 << 20)) <= vmem_budget
            fits_target = nb * per_batch_io <= target_block
            if fits_vmem and fits_target and nb <= max_nb_for_grid:
                Nb = nb
    else:
        Nb = int(batch_block)

    n_steps = -(-N // Nb)                       # pl.cdiv
    N_pad = n_steps * Nb

    x_flat = x.reshape(N, C, HW)                # lane-dense presentation
    if N_pad != N:
        # Zero-pad awkward batch sizes instead of collapsing to tiny slabs;
        # padded rows are discarded after the call.
        x_flat = jnp.pad(x_flat, ((0, N_pad - N), (0, 0), (0, 0)))

    # Fold 1/C (channel mean) into the avg-channel conv weights.
    w32 = weight.astype(jnp.float32)
    w32 = w32.at[:, 0].multiply(1.0 / C)
    w_flat = w32.reshape(-1)                    # (2*KS*KS,)
    b = bias.reshape(1).astype(jnp.float32)

    # Static row/col index maps for boundary masking (tiny, computed once).
    k = jnp.arange(HW, dtype=jnp.int32)
    idx = jnp.stack([k // W, k % W], axis=0)    # (2, HW) int32

    block_bytes = Nb * per_batch_io
    need = 4 * block_bytes + Nb * per_batch_tmp + (4 << 20)
    vmem_limit = int(min(vmem_budget, max(32 << 20, need)))
    # TODO(synk): for very large C*H*W slabs that don't fit double-buffered under
    # the budget even at Nb=1 (e.g. 256x112x112 f32 on v7x), add a channel-tile
    # grid axis ("arbitrary") that accumulates mean/max into a resident (Nb,HW)
    # scratch in pass 1 and gates/stores in pass 2.

    kernel = functools.partial(_spatial_attention_kernel, H=H, W=W, KS=KS, Nb=Nb)

    flops = N_pad * (3 * C * HW + 2 * 2 * KS * KS * HW)
    bytes_accessed = 2 * N_pad * C * HW * itemsize + 2 * HW * 4

    out_flat = pl.pallas_call(
        kernel,
        out_shape=jax.ShapeDtypeStruct((N_pad, C, HW), x.dtype),
        grid_spec=pltpu.PrefetchScalarGridSpec(
            num_scalar_prefetch=0,
            grid=(n_steps,),
            in_specs=[
                pl.BlockSpec(memory_space=pltpu.MemorySpace.SMEM),    # conv weights
                pl.BlockSpec(memory_space=pltpu.MemorySpace.SMEM),    # conv bias
                pl.BlockSpec((2, HW), lambda n: (0, 0)),              # row/col indices
                pl.BlockSpec((Nb, C, HW), lambda n: (n, 0, 0)),       # x slab
            ],
            out_specs=pl.BlockSpec((Nb, C, HW), lambda n: (n, 0, 0)),
        ),
        compiler_params=pltpu.CompilerParams(
            dimension_semantics=("parallel",),
            vmem_limit_bytes=vmem_limit,
        ),
        cost_estimate=pl.CostEstimate(
            flops=flops, transcendentals=N_pad * HW, bytes_accessed=bytes_accessed),
    )(w_flat, b, idx, x_flat)

    return out_flat[:N].reshape(N, C, H, W)


def spatial_attention_ref(x, weight, bias):
    """Pure-JAX reference matching the PyTorch forward."""
    avg = jnp.mean(x, axis=1, keepdims=True)
    mx = jnp.max(x, axis=1, keepdims=True)
    cat = jnp.concatenate([avg, mx], axis=1)
    conv = lax.conv_general_dilated(
        cat, weight, window_strides=(1, 1), padding="SAME",
        dimension_numbers=("NCHW", "OIHW", "NCHW"),
    )
    conv = conv + bias.reshape(1, 1, 1, 1)
    return jax.nn.sigmoid(conv) * x


if __name__ == "__main__":
    N, C, H, W, KS = 2, 4, 16, 16, 7

    key = jax.random.PRNGKey(0)
    kx, kw, kb = jax.random.split(key, 3)

    x = jax.random.normal(kx, (N, C, H, W), dtype=jnp.float32)

    # Deterministic Conv2d(2, 1, 7, padding=3) params (kaiming-uniform-like bounds).
    fan_in = 2 * KS * KS
    bound = 1.0 / (fan_in ** 0.5)
    weight = jax.random.uniform(kw, (1, 2, KS, KS), jnp.float32, -bound, bound)
    bias = jax.random.uniform(kb, (1,), jnp.float32, -bound, bound)

    out = spatial_attention(x, weight, bias)
    out = jax.block_until_ready(out)

    ref = spatial_attention_ref(x, weight, bias)
    assert out.shape == (N, C, H, W)
    err = float(jnp.max(jnp.abs(out - ref)))
    assert jnp.allclose(out, ref, atol=1e-5, rtol=1e-5), err

    print("KERNEL_OK")
</pallas_src>

<mosaic_0001>
module attributes {stable_mosaic.version = 11 : i64} {
  func.func @_spatial_attention_kernel(%arg0: i32, %arg1: memref<98xf32, #tpu.memory_space<smem>>, %arg2: memref<1xf32, #tpu.memory_space<smem>>, %arg3: memref<2x256xi32, #tpu.memory_space<vmem>>, %arg4: memref<1x4x256xf32, #tpu.memory_space<vmem>>, %arg5: memref<1x4x256xf32, #tpu.memory_space<vmem>>) attributes {dimension_semantics = [#tpu.dimension_semantics<parallel>], iteration_bounds = array<i64: 2>, scalar_prefetch = 0 : i64, scratch_operands = 0 : i64, tpu.core_type = #tpu.core_type<tc>, window_params = [{transform_indices = @transform_0, window_bounds = array<i64: 98>}, {transform_indices = @transform_1, window_bounds = array<i64: 1>}, {pipeline_mode = #tpu.pipeline_mode<synchronous>, transform_indices = @transform_2, window_bounds = array<i64: 2, 256>}, {transform_indices = @transform_3, window_bounds = array<i64: 1, 4, 256>}, {transform_indices = @transform_4, window_bounds = array<i64: 1, 4, 256>}]} {
    %c0 = arith.constant 0 : index
    %c0_0 = arith.constant 0 : index
    %c0_1 = arith.constant 0 : index
    %0 = vector.load %arg4[%c0, %c0_0, %c0_1] : memref<1x4x256xf32, #tpu.memory_space<vmem>>, vector<1x4x256xf32>
    %cst = arith.constant dense<0.000000e+00> : vector<1x256xf32>
    %1 = vector.multi_reduction <add>, %0, %cst [1] : vector<1x4x256xf32> to vector<1x256xf32>
    %cst_2 = arith.constant dense<0xFF800000> : vector<1x256xf32>
    %2 = vector.multi_reduction <maximumf>, %0, %cst_2 [1] : vector<1x4x256xf32> to vector<1x256xf32>
    %c0_3 = arith.constant 0 : index
    %c0_4 = arith.constant 0 : index
    %3 = vector.load %arg3[%c0_3, %c0_4] : memref<2x256xi32, #tpu.memory_space<vmem>>, vector<1x256xi32>
    %c1 = arith.constant 1 : index
    %c0_5 = arith.constant 0 : index
    %4 = vector.load %arg3[%c1, %c0_5] : memref<2x256xi32, #tpu.memory_space<vmem>>, vector<1x256xi32>
    %c3_i32 = arith.constant 3 : i32
    %5 = vector.broadcast %c3_i32 : i32 to vector<1x256xi32>
    %6 = arith.cmpi sge, %4, %5 : vector<1x256xi32>
    %c3_i32_6 = arith.constant 3 : i32
    %7 = vector.broadcast %c3_i32_6 : i32 to vector<1x256xi32>
    %8 = arith.cmpi sge, %3, %7 : vector<1x256xi32>
    %c2_i32 = arith.constant 2 : i32
    %9 = vector.broadcast %c2_i32 : i32 to vector<1x256xi32>
    %10 = arith.cmpi sge, %4, %9 : vector<1x256xi32>
    %c2_i32_7 = arith.constant 2 : i32
    %11 = vector.broadcast %c2_i32_7 : i32 to vector<1x256xi32>
    %12 = arith.cmpi sge, %3, %11 : vector<1x256xi32>
    %c1_i32 = arith.constant 1 : i32
    %13 = vector.broadcast %c1_i32 : i32 to vector<1x256xi32>
    %14 = arith.cmpi sge, %4, %13 : vector<1x256xi32>
    %c1_i32_8 = arith.constant 1 : i32
    %15 = vector.broadcast %c1_i32_8 : i32 to vector<1x256xi32>
    %16 = arith.cmpi sge, %3, %15 : vector<1x256xi32>
    %c15_i32 = arith.constant 15 : i32
    %17 = vector.broadcast %c15_i32 : i32 to vector<1x256xi32>
    %18 = arith.cmpi slt, %4, %17 : vector<1x256xi32>
    %c15_i32_9 = arith.constant 15 : i32
    %19 = vector.broadcast %c15_i32_9 : i32 to vector<1x256xi32>
    %20 = arith.cmpi slt, %3, %19 : vector<1x256xi32>
    %c14_i32 = arith.constant 14 : i32
    %21 = vector.broadcast %c14_i32 : i32 to vector<1x256xi32>
    %22 = arith.cmpi slt, %4, %21 : vector<1x256xi32>
    %c14_i32_10 = arith.constant 14 : i32
    %23 = vector.broadcast %c14_i32_10 : i32 to vector<1x256xi32>
    %24 = arith.cmpi slt, %3, %23 : vector<1x256xi32>
    %c13_i32 = arith.constant 13 : i32
    %25 = vector.broadcast %c13_i32 : i32 to vector<1x256xi32>
    %26 = arith.cmpi slt, %4, %25 : vector<1x256xi32>
    %c13_i32_11 = arith.constant 13 : i32
    %27 = vector.broadcast %c13_i32_11 : i32 to vector<1x256xi32>
    %28 = arith.cmpi slt, %3, %27 : vector<1x256xi32>
    %c3_i32_12 = arith.constant 3 : i32
    %29 = tpu.dynamic_rotate %1 by %c3_i32_12 dim 1 : vector<1x256xf32>, i32 -> vector<1x256xf32>
    %cst_13 = arith.constant 0.000000e+00 : f32
    %30 = vector.broadcast %cst_13 : f32 to vector<1x256xf32>
    %31 = arith.select %6, %29, %30 : vector<1x256xi1>, vector<1x256xf32>
    %c3_i32_14 = arith.constant 3 : i32
    %32 = tpu.dynamic_rotate %2 by %c3_i32_14 dim 1 : vector<1x256xf32>, i32 -> vector<1x256xf32>
    %cst_15 = arith.constant 0.000000e+00 : f32
    %33 = vector.broadcast %cst_15 : f32 to vector<1x256xf32>
    %34 = arith.select %6, %32, %33 : vector<1x256xi1>, vector<1x256xf32>
    %c0_16 = arith.constant 0 : index
    %35 = memref.load %arg1[%c0_16] : memref<98xf32, #tpu.memory_space<smem>>
    %36 = vector.broadcast %35 : f32 to vector<1x256xf32>
    %37 = arith.mulf %36, %31 : vector<1x256xf32>
    %c49 = arith.constant 49 : index
    %38 = memref.load %arg1[%c49] : memref<98xf32, #tpu.memory_space<smem>>
    %39 = vector.broadcast %38 : f32 to vector<1x256xf32>
    %40 = arith.mulf %39, %34 : vector<1x256xf32>
    %41 = arith.addf %37, %40 : vector<1x256xf32>
    %c7 = arith.constant 7 : index
    %42 = memref.load %arg1[%c7] : memref<98xf32, #tpu.memory_space<smem>>
    %43 = vector.broadcast %42 : f32 to vector<1x256xf32>
    %44 = arith.mulf %43, %31 : vector<1x256xf32>
    %c56 = arith.constant 56 : index
    %45 = memref.load %arg1[%c56] : memref<98xf32, #tpu.memory_space<smem>>
    %46 = vector.broadcast %45 : f32 to vector<1x256xf32>
    %47 = arith.mulf %46, %34 : vector<1x256xf32>
    %48 = arith.addf %44, %47 : vector<1x256xf32>
    %c14 = arith.constant 14 : index
    %49 = memref.load %arg1[%c14] : memref<98xf32, #tpu.memory_space<smem>>
    %50 = vector.broadcast %49 : f32 to vector<1x256xf32>
    %51 = arith.mulf %50, %31 : vector<1x256xf32>
    %c63 = arith.constant 63 : index
    %52 = memref.load %arg1[%c63] : memref<98xf32, #tpu.memory_space<smem>>
    %53 = vector.broadcast %52 : f32 to vector<1x256xf32>
    %54 = arith.mulf %53, %34 : vector<1x256xf32>
    %55 = arith.addf %51, %54 : vector<1x256xf32>
    %c21 = arith.constant 21 : index
    %56 = memref.load %arg1[%c21] : memref<98xf32, #tpu.memory_space<smem>>
    %57 = vector.broadcast %56 : f32 to vector<1x256xf32>
    %58 = arith.mulf %57, %31 : vector<1x256xf32>
    %c70 = arith.constant 70 : index
    %59 = memref.load %arg1[%c70] : memref<98xf32, #tpu.memory_space<smem>>
    %60 = vector.broadcast %59 : f32 to vector<1x256xf32>
    %61 = arith.mulf %60, %34 : vector<1x256xf32>
    %62 = arith.addf %58, %61 : vector<1x256xf32>
    %c28 = arith.constant 28 : index
    %63 = memref.load %arg1[%c28] : memref<98xf32, #tpu.memory_space<smem>>
    %64 = vector.broadcast %63 : f32 to vector<1x256xf32>
    %65 = arith.mulf %64, %31 : vector<1x256xf32>
    %c77 = arith.constant 77 : index
    %66 = memref.load %arg1[%c77] : memref<98xf32, #tpu.memory_space<smem>>
    %67 = vector.broadcast %66 : f32 to vector<1x256xf32>
    %68 = arith.mulf %67, %34 : vector<1x256xf32>
    %69 = arith.addf %65, %68 : vector<1x256xf32>
    %c35 = arith.constant 35 : index
    %70 = memref.load %arg1[%c35] : memref<98xf32, #tpu.memory_space<smem>>
    %71 = vector.broadcast %70 : f32 to vector<1x256xf32>
    %72 = arith.mulf %71, %31 : vector<1x256xf32>
    %c84 = arith.constant 84 : index
    %73 = memref.load %arg1[%c84] : memref<98xf32, #tpu.memory_space<smem>>
    %74 = vector.broadcast %73 : f32 to vector<1x256xf32>
    %75 = arith.mulf %74, %34 : vector<1x256xf32>
    %76 = arith.addf %72, %75 : vector<1x256xf32>
    %c42 = arith.constant 42 : index
    %77 = memref.load %arg1[%c42] : memref<98xf32, #tpu.memory_space<smem>>
    %78 = vector.broadcast %77 : f32 to vector<1x256xf32>
    %79 = arith.mulf %78, %31 : vector<1x256xf32>
    %c91 = arith.constant 91 : index
    %80 = memref.load %arg1[%c91] : memref<98xf32, #tpu.memory_space<smem>>
    %81 = vector.broadcast %80 : f32 to vector<1x256xf32>
    %82 = arith.mulf %81, %34 : vector<1x256xf32>
    %83 = arith.addf %79, %82 : vector<1x256xf32>
    %c2_i32_17 = arith.constant 2 : i32
    %84 = tpu.dynamic_rotate %1 by %c2_i32_17 dim 1 : vector<1x256xf32>, i32 -> vector<1x256xf32>
    %cst_18 = arith.constant 0.000000e+00 : f32
    %85 = vector.broadcast %cst_18 : f32 to vector<1x256xf32>
    %86 = arith.select %10, %84, %85 : vector<1x256xi1>, vector<1x256xf32>
    %c2_i32_19 = arith.constant 2 : i32
    %87 = tpu.dynamic_rotate %2 by %c2_i32_19 dim 1 : vector<1x256xf32>, i32 -> vector<1x256xf32>
    %cst_20 = arith.constant 0.000000e+00 : f32
    %88 = vector.broadcast %cst_20 : f32 to vector<1x256xf32>
    %89 = arith.select %10, %87, %88 : vector<1x256xi1>, vector<1x256xf32>
    %c1_21 = arith.constant 1 : index
    %90 = memref.load %arg1[%c1_21] : memref<98xf32, #tpu.memory_space<smem>>
    %91 = vector.broadcast %90 : f32 to vector<1x256xf32>
    %92 = arith.mulf %91, %86 : vector<1x256xf32>
    %c50 = arith.constant 50 : index
    %93 = memref.load %arg1[%c50] : memref<98xf32, #tpu.memory_space<smem>>
    %94 = vector.broadcast %93 : f32 to vector<1x256xf32>
    %95 = arith.mulf %94, %89 : vector<1x256xf32>
    %96 = arith.addf %92, %95 : vector<1x256xf32>
    %97 = arith.addf %41, %96 : vector<1x256xf32>
    %c8 = arith.constant 8 : index
    %98 = memref.load %arg1[%c8] : memref<98xf32, #tpu.memory_space<smem>>
    %99 = vector.broadcast %98 : f32 to vector<1x256xf32>
    %100 = arith.mulf %99, %86 : vector<1x256xf32>
    %c57 = arith.constant 57 : index
    %101 = memref.load %arg1[%c57] : memref<98xf32, #tpu.memory_space<smem>>
    %102 = vector.broadcast %101 : f32 to vector<1x256xf32>
    %103 = arith.mulf %102, %89 : vector<1x256xf32>
    %104 = arith.addf %100, %103 : vector<1x256xf32>
    %105 = arith.addf %48, %104 : vector<1x256xf32>
    %c15 = arith.constant 15 : index
    %106 = memref.load %arg1[%c15] : memref<98xf32, #tpu.memory_space<smem>>
    %107 = vector.broadcast %106 : f32 to vector<1x256xf32>
    %108 = arith.mulf %107, %86 : vector<1x256xf32>
    %c64 = arith.constant 64 : index
    %109 = memref.load %arg1[%c64] : memref<98xf32, #tpu.memory_space<smem>>
    %110 = vector.broadcast %109 : f32 to vector<1x256xf32>
    %111 = arith.mulf %110, %89 : vector<1x256xf32>
    %112 = arith.addf %108, %111 : vector<1x256xf32>
    %113 = arith.addf %55, %112 : vector<1x256xf32>
    %c22 = arith.constant 22 : index
    %114 = memref.load %arg1[%c22] : memref<98xf32, #tpu.memory_space<smem>>
    %115 = vector.broadcast %114 : f32 to vector<1x256xf32>
    %116 = arith.mulf %115, %86 : vector<1x256xf32>
    %c71 = arith.constant 71 : index
    %117 = memref.load %arg1[%c71] : memref<98xf32, #tpu.memory_space<smem>>
    %118 = vector.broadcast %117 : f32 to vector<1x256xf32>
    %119 = arith.mulf %118, %89 : vector<1x256xf32>
    %120 = arith.addf %116, %119 : vector<1x256xf32>
    %121 = arith.addf %62, %120 : vector<1x256xf32>
    %c29 = arith.constant 29 : index
    %122 = memref.load %arg1[%c29] : memref<98xf32, #tpu.memory_space<smem>>
    %123 = vector.broadcast %122 : f32 to vector<1x256xf32>
    %124 = arith.mulf %123, %86 : vector<1x256xf32>
    %c78 = arith.constant 78 : index
    %125 = memref.load %arg1[%c78] : memref<98xf32, #tpu.memory_space<smem>>
    %126 = vector.broadcast %125 : f32 to vector<1x256xf32>
    %127 = arith.mulf %126, %89 : vector<1x256xf32>
    %128 = arith.addf %124, %127 : vector<1x256xf32>
    %129 = arith.addf %69, %128 : vector<1x256xf32>
    %c36 = arith.constant 36 : index
    %130 = memref.load %arg1[%c36] : memref<98xf32, #tpu.memory_space<smem>>
    %131 = vector.broadcast %130 : f32 to vector<1x256xf32>
    %132 = arith.mulf %131, %86 : vector<1x256xf32>
    %c85 = arith.constant 85 : index
    %133 = memref.load %arg1[%c85] : memref<98xf32, #tpu.memory_space<smem>>
    %134 = vector.broadcast %133 : f32 to vector<1x256xf32>
    %135 = arith.mulf %134, %89 : vector<1x256xf32>
    %136 = arith.addf %132, %135 : vector<1x256xf32>
    %137 = arith.addf %76, %136 : vector<1x256xf32>
    %c43 = arith.constant 43 : index
    %138 = memref.load %arg1[%c43] : memref<98xf32, #tpu.memory_space<smem>>
    %139 = vector.broadcast %138 : f32 to vector<1x256xf32>
    %140 = arith.mulf %139, %86 : vector<1x256xf32>
    %c92 = arith.constant 92 : index
    %141 = memref.load %arg1[%c92] : memref<98xf32, #tpu.memory_space<smem>>
    %142 = vector.broadcast %141 : f32 to vector<1x256xf32>
    %143 = arith.mulf %142, %89 : vector<1x256xf32>
    %144 = arith.addf %140, %143 : vector<1x256xf32>
    %145 = arith.addf %83, %144 : vector<1x256xf32>
    %c1_i32_22 = arith.constant 1 : i32
    %146 = tpu.dynamic_rotate %1 by %c1_i32_22 dim 1 : vector<1x256xf32>, i32 -> vector<1x256xf32>
    %cst_23 = arith.constant 0.000000e+00 : f32
    %147 = vector.broadcast %cst_23 : f32 to vector<1x256xf32>
    %148 = arith.select %14, %146, %147 : vector<1x256xi1>, vector<1x256xf32>
    %c1_i32_24 = arith.constant 1 : i32
    %149 = tpu.dynamic_rotate %2 by %c1_i32_24 dim 1 : vector<1x256xf32>, i32 -> vector<1x256xf32>
    %cst_25 = arith.constant 0.000000e+00 : f32
    %150 = vector.broadcast %cst_25 : f32 to vector<1x256xf32>
    %151 = arith.select %14, %149, %150 : vector<1x256xi1>, vector<1x256xf32>
    %c2 = arith.constant 2 : index
    %152 = memref.load %arg1[%c2] : memref<98xf32, #tpu.memory_space<smem>>
    %153 = vector.broadcast %152 : f32 to vector<1x256xf32>
    %154 = arith.mulf %153, %148 : vector<1x256xf32>
    %c51 = arith.constant 51 : index
    %155 = memref.load %arg1[%c51] : memref<98xf32, #tpu.memory_space<smem>>
    %156 = vector.broadcast %155 : f32 to vector<1x256xf32>
    %157 = arith.mulf %156, %151 : vector<1x256xf32>
    %158 = arith.addf %154, %157 : vector<1x256xf32>
    %159 = arith.addf %97, %158 : vector<1x256xf32>
    %c9 = arith.constant 9 : index
    %160 = memref.load %arg1[%c9] : memref<98xf32, #tpu.memory_space<smem>>
    %161 = vector.broadcast %160 : f32 to vector<1x256xf32>
    %162 = arith.mulf %161, %148 : vector<1x256xf32>
    %c58 = arith.constant 58 : index
    %163 = memref.load %arg1[%c58] : memref<98xf32, #tpu.memory_space<smem>>
    %164 = vector.broadcast %163 : f32 to vector<1x256xf32>
    %165 = arith.mulf %164, %151 : vector<1x256xf32>
    %166 = arith.addf %162, %165 : vector<1x256xf32>
    %167 = arith.addf %105, %166 : vector<1x256xf32>
    %c16 = arith.constant 16 : index
    %168 = memref.load %arg1[%c16] : memref<98xf32, #tpu.memory_space<smem>>
    %169 = vector.broadcast %168 : f32 to vector<1x256xf32>
    %170 = arith.mulf %169, %148 : vector<1x256xf32>
    %c65 = arith.constant 65 : index
    %171 = memref.load %arg1[%c65] : memref<98xf32, #tpu.memory_space<smem>>
    %172 = vector.broadcast %171 : f32 to vector<1x256xf32>
    %173 = arith.mulf %172, %151 : vector<1x256xf32>
    %174 = arith.addf %170, %173 : vector<1x256xf32>
    %175 = arith.addf %113, %174 : vector<1x256xf32>
    %c23 = arith.constant 23 : index
    %176 = memref.load %arg1[%c23] : memref<98xf32, #tpu.memory_space<smem>>
    %177 = vector.broadcast %176 : f32 to vector<1x256xf32>
    %178 = arith.mulf %177, %148 : vector<1x256xf32>
    %c72 = arith.constant 72 : index
    %179 = memref.load %arg1[%c72] : memref<98xf32, #tpu.memory_space<smem>>
    %180 = vector.broadcast %179 : f32 to vector<1x256xf32>
    %181 = arith.mulf %180, %151 : vector<1x256xf32>
    %182 = arith.addf %178, %181 : vector<1x256xf32>
    %183 = arith.addf %121, %182 : vector<1x256xf32>
    %c30 = arith.constant 30 : index
    %184 = memref.load %arg1[%c30] : memref<98xf32, #tpu.memory_space<smem>>
    %185 = vector.broadcast %184 : f32 to vector<1x256xf32>
    %186 = arith.mulf %185, %148 : vector<1x256xf32>
    %c79 = arith.constant 79 : index
    %187 = memref.load %arg1[%c79] : memref<98xf32, #tpu.memory_space<smem>>
    %188 = vector.broadcast %187 : f32 to vector<1x256xf32>
    %189 = arith.mulf %188, %151 : vector<1x256xf32>
    %190 = arith.addf %186, %189 : vector<1x256xf32>
    %191 = arith.addf %129, %190 : vector<1x256xf32>
    %c37 = arith.constant 37 : index
    %192 = memref.load %arg1[%c37] : memref<98xf32, #tpu.memory_space<smem>>
    %193 = vector.broadcast %192 : f32 to vector<1x256xf32>
    %194 = arith.mulf %193, %148 : vector<1x256xf32>
    %c86 = arith.constant 86 : index
    %195 = memref.load %arg1[%c86] : memref<98xf32, #tpu.memory_space<smem>>
    %196 = vector.broadcast %195 : f32 to vector<1x256xf32>
    %197 = arith.mulf %196, %151 : vector<1x256xf32>
    %198 = arith.addf %194, %197 : vector<1x256xf32>
    %199 = arith.addf %137, %198 : vector<1x256xf32>
    %c44 = arith.constant 44 : index
    %200 = memref.load %arg1[%c44] : memref<98xf32, #tpu.memory_space<smem>>
    %201 = vector.broadcast %200 : f32 to vector<1x256xf32>
    %202 = arith.mulf %201, %148 : vector<1x256xf32>
    %c93 = arith.constant 93 : index
    %203 = memref.load %arg1[%c93] : memref<98xf32, #tpu.memory_space<smem>>
    %204 = vector.broadcast %203 : f32 to vector<1x256xf32>
    %205 = arith.mulf %204, %151 : vector<1x256xf32>
    %206 = arith.addf %202, %205 : vector<1x256xf32>
    %207 = arith.addf %145, %206 : vector<1x256xf32>
    %c3 = arith.constant 3 : index
    %208 = memref.load %arg1[%c3] : memref<98xf32, #tpu.memory_space<smem>>
    %209 = vector.broadcast %208 : f32 to vector<1x256xf32>
    %210 = arith.mulf %209, %1 : vector<1x256xf32>
    %c52 = arith.constant 52 : index
    %211 = memref.load %arg1[%c52] : memref<98xf32, #tpu.memory_space<smem>>
    %212 = vector.broadcast %211 : f32 to vector<1x256xf32>
    %213 = arith.mulf %212, %2 : vector<1x256xf32>
    %214 = arith.addf %210, %213 : vector<1x256xf32>
    %215 = arith.addf %159, %214 : vector<1x256xf32>
    %c10 = arith.constant 10 : index
    %216 = memref.load %arg1[%c10] : memref<98xf32, #tpu.memory_space<smem>>
    %217 = vector.broadcast %216 : f32 to vector<1x256xf32>
    %218 = arith.mulf %217, %1 : vector<1x256xf32>
    %c59 = arith.constant 59 : index
    %219 = memref.load %arg1[%c59] : memref<98xf32, #tpu.memory_space<smem>>
    %220 = vector.broadcast %219 : f32 to vector<1x256xf32>
    %221 = arith.mulf %220, %2 : vector<1x256xf32>
    %222 = arith.addf %218, %221 : vector<1x256xf32>
    %223 = arith.addf %167, %222 : vector<1x256xf32>
    %c17 = arith.constant 17 : index
    %224 = memref.load %arg1[%c17] : memref<98xf32, #tpu.memory_space<smem>>
    %225 = vector.broadcast %224 : f32 to vector<1x256xf32>
    %226 = arith.mulf %225, %1 : vector<1x256xf32>
    %c66 = arith.constant 66 : index
    %227 = memref.load %arg1[%c66] : memref<98xf32, #tpu.memory_space<smem>>
    %228 = vector.broadcast %227 : f32 to vector<1x256xf32>
    %229 = arith.mulf %228, %2 : vector<1x256xf32>
    %230 = arith.addf %226, %229 : vector<1x256xf32>
    %231 = arith.addf %175, %230 : vector<1x256xf32>
    %c24 = arith.constant 24 : index
    %232 = memref.load %arg1[%c24] : memref<98xf32, #tpu.memory_space<smem>>
    %233 = vector.broadcast %232 : f32 to vector<1x256xf32>
    %234 = arith.mulf %233, %1 : vector<1x256xf32>
    %c73 = arith.constant 73 : index
    %235 = memref.load %arg1[%c73] : memref<98xf32, #tpu.memory_space<smem>>
    %236 = vector.broadcast %235 : f32 to vector<1x256xf32>
    %237 = arith.mulf %236, %2 : vector<1x256xf32>
    %238 = arith.addf %234, %237 : vector<1x256xf32>
    %239 = arith.addf %183, %238 : vector<1x256xf32>
    %c31 = arith.constant 31 : index
    %240 = memref.load %arg1[%c31] : memref<98xf32, #tpu.memory_space<smem>>
    %241 = vector.broadcast %240 : f32 to vector<1x256xf32>
    %242 = arith.mulf %241, %1 : vector<1x256xf32>
    %c80 = arith.constant 80 : index
    %243 = memref.load %arg1[%c80] : memref<98xf32, #tpu.memory_space<smem>>
    %244 = vector.broadcast %243 : f32 to vector<1x256xf32>
    %245 = arith.mulf %244, %2 : vector<1x256xf32>
    %246 = arith.addf %242, %245 : vector<1x256xf32>
    %247 = arith.addf %191, %246 : vector<1x256xf32>
    %c38 = arith.constant 38 : index
    %248 = memref.load %arg1[%c38] : memref<98xf32, #tpu.memory_space<smem>>
    %249 = vector.broadcast %248 : f32 to vector<1x256xf32>
    %250 = arith.mulf %249, %1 : vector<1x256xf32>
    %c87 = arith.constant 87 : index
    %251 = memref.load %arg1[%c87] : memref<98xf32, #tpu.memory_space<smem>>
    %252 = vector.broadcast %251 : f32 to vector<1x256xf32>
    %253 = arith.mulf %252, %2 : vector<1x256xf32>
    %254 = arith.addf %250, %253 : vector<1x256xf32>
    %255 = arith.addf %199, %254 : vector<1x256xf32>
    %c45 = arith.constant 45 : index
    %256 = memref.load %arg1[%c45] : memref<98xf32, #tpu.memory_space<smem>>
    %257 = vector.broadcast %256 : f32 to vector<1x256xf32>
    %258 = arith.mulf %257, %1 : vector<1x256xf32>
    %c94 = arith.constant 94 : index
    %259 = memref.load %arg1[%c94] : memref<98xf32, #tpu.memory_space<smem>>
    %260 = vector.broadcast %259 : f32 to vector<1x256xf32>
    %261 = arith.mulf %260, %2 : vector<1x256xf32>
    %262 = arith.addf %258, %261 : vector<1x256xf32>
    %263 = arith.addf %207, %262 : vector<1x256xf32>
    %c255_i32 = arith.constant 255 : i32
    %264 = tpu.dynamic_rotate %1 by %c255_i32 dim 1 : vector<1x256xf32>, i32 -> vector<1x256xf32>
    %cst_26 = arith.constant 0.000000e+00 : f32
    %265 = vector.broadcast %cst_26 : f32 to vector<1x256xf32>
    %266 = arith.select %18, %264, %265 : vector<1x256xi1>, vector<1x256xf32>
    %c255_i32_27 = arith.constant 255 : i32
    %267 = tpu.dynamic_rotate %2 by %c255_i32_27 dim 1 : vector<1x256xf32>, i32 -> vector<1x256xf32>
    %cst_28 = arith.constant 0.000000e+00 : f32
    %268 = vector.broadcast %cst_28 : f32 to vector<1x256xf32>
    %269 = arith.select %18, %267, %268 : vector<1x256xi1>, vector<1x256xf32>
    %c4 = arith.constant 4 : index
    %270 = memref.load %arg1[%c4] : memref<98xf32, #tpu.memory_space<smem>>
    %271 = vector.broadcast %270 : f32 to vector<1x256xf32>
    %272 = arith.mulf %271, %266 : vector<1x256xf32>
    %c53 = arith.constant 53 : index
    %273 = memref.load %arg1[%c53] : memref<98xf32, #tpu.memory_space<smem>>
    %274 = vector.broadcast %273 : f32 to vector<1x256xf32>
    %275 = arith.mulf %274, %269 : vector<1x256xf32>
    %276 = arith.addf %272, %275 : vector<1x256xf32>
    %277 = arith.addf %215, %276 : vector<1x256xf32>
    %c11 = arith.constant 11 : index
    %278 = memref.load %arg1[%c11] : memref<98xf32, #tpu.memory_space<smem>>
    %279 = vector.broadcast %278 : f32 to vector<1x256xf32>
    %280 = arith.mulf %279, %266 : vector<1x256xf32>
    %c60 = arith.constant 60 : index
    %281 = memref.load %arg1[%c60] : memref<98xf32, #tpu.memory_space<smem>>
    %282 = vector.broadcast %281 : f32 to vector<1x256xf32>
    %283 = arith.mulf %282, %269 : vector<1x256xf32>
    %284 = arith.addf %280, %283 : vector<1x256xf32>
    %285 = arith.addf %223, %284 : vector<1x256xf32>
    %c18 = arith.constant 18 : index
    %286 = memref.load %arg1[%c18] : memref<98xf32, #tpu.memory_space<smem>>
    %287 = vector.broadcast %286 : f32 to vector<1x256xf32>
    %288 = arith.mulf %287, %266 : vector<1x256xf32>
    %c67 = arith.constant 67 : index
    %289 = memref.load %arg1[%c67] : memref<98xf32, #tpu.memory_space<smem>>
    %290 = vector.broadcast %289 : f32 to vector<1x256xf32>
    %291 = arith.mulf %290, %269 : vector<1x256xf32>
    %292 = arith.addf %288, %291 : vector<1x256xf32>
    %293 = arith.addf %231, %292 : vector<1x256xf32>
    %c25 = arith.constant 25 : index
    %294 = memref.load %arg1[%c25] : memref<98xf32, #tpu.memory_space<smem>>
    %295 = vector.broadcast %294 : f32 to vector<1x256xf32>
    %296 = arith.mulf %295, %266 : vector<1x256xf32>
    %c74 = arith.constant 74 : index
    %297 = memref.load %arg1[%c74] : memref<98xf32, #tpu.memory_space<smem>>
    %298 = vector.broadcast %297 : f32 to vector<1x256xf32>
    %299 = arith.mulf %298, %269 : vector<1x256xf32>
    %300 = arith.addf %296, %299 : vector<1x256xf32>
    %301 = arith.addf %239, %300 : vector<1x256xf32>
    %c32 = arith.constant 32 : index
    %302 = memref.load %arg1[%c32] : memref<98xf32, #tpu.memory_space<smem>>
    %303 = vector.broadcast %302 : f32 to vector<1x256xf32>
    %304 = arith.mulf %303, %266 : vector<1x256xf32>
    %c81 = arith.constant 81 : index
    %305 = memref.load %arg1[%c81] : memref<98xf32, #tpu.memory_space<smem>>
    %306 = vector.broadcast %305 : f32 to vector<1x256xf32>
    %307 = arith.mulf %306, %269 : vector<1x256xf32>
    %308 = arith.addf %304, %307 : vector<1x256xf32>
    %309 = arith.addf %247, %308 : vector<1x256xf32>
    %c39 = arith.constant 39 : index
    %310 = memref.load %arg1[%c39] : memref<98xf32, #tpu.memory_space<smem>>
    %311 = vector.broadcast %310 : f32 to vector<1x256xf32>
    %312 = arith.mulf %311, %266 : vector<1x256xf32>
    %c88 = arith.constant 88 : index
    %313 = memref.load %arg1[%c88] : memref<98xf32, #tpu.memory_space<smem>>
    %314 = vector.broadcast %313 : f32 to vector<1x256xf32>
    %315 = arith.mulf %314, %269 : vector<1x256xf32>
    %316 = arith.addf %312, %315 : vector<1x256xf32>
    %317 = arith.addf %255, %316 : vector<1x256xf32>
    %c46 = arith.constant 46 : index
    %318 = memref.load %arg1[%c46] : memref<98xf32, #tpu.memory_space<smem>>
    %319 = vector.broadcast %318 : f32 to vector<1x256xf32>
    %320 = arith.mulf %319, %266 : vector<1x256xf32>
    %c95 = arith.constant 95 : index
    %321 = memref.load %arg1[%c95] : memref<98xf32, #tpu.memory_space<smem>>
    %322 = vector.broadcast %321 : f32 to vector<1x256xf32>
    %323 = arith.mulf %322, %269 : vector<1x256xf32>
    %324 = arith.addf %320, %323 : vector<1x256xf32>
    %325 = arith.addf %263, %324 : vector<1x256xf32>
    %c254_i32 = arith.constant 254 : i32
    %326 = tpu.dynamic_rotate %1 by %c254_i32 dim 1 : vector<1x256xf32>, i32 -> vector<1x256xf32>
    %cst_29 = arith.constant 0.000000e+00 : f32
    %327 = vector.broadcast %cst_29 : f32 to vector<1x256xf32>
    %328 = arith.select %22, %326, %327 : vector<1x256xi1>, vector<1x256xf32>
    %c254_i32_30 = arith.constant 254 : i32
    %329 = tpu.dynamic_rotate %2 by %c254_i32_30 dim 1 : vector<1x256xf32>, i32 -> vector<1x256xf32>
    %cst_31 = arith.constant 0.000000e+00 : f32
    %330 = vector.broadcast %cst_31 : f32 to vector<1x256xf32>
    %331 = arith.select %22, %329, %330 : vector<1x256xi1>, vector<1x256xf32>
    %c5 = arith.constant 5 : index
    %332 = memref.load %arg1[%c5] : memref<98xf32, #tpu.memory_space<smem>>
    %333 = vector.broadcast %332 : f32 to vector<1x256xf32>
    %334 = arith.mulf %333, %328 : vector<1x256xf32>
    %c54 = arith.constant 54 : index
    %335 = memref.load %arg1[%c54] : memref<98xf32, #tpu.memory_space<smem>>
    %336 = vector.broadcast %335 : f32 to vector<1x256xf32>
    %337 = arith.mulf %336, %331 : vector<1x256xf32>
    %338 = arith.addf %334, %337 : vector<1x256xf32>
    %339 = arith.addf %277, %338 : vector<1x256xf32>
    %c12 = arith.constant 12 : index
    %340 = memref.load %arg1[%c12] : memref<98xf32, #tpu.memory_space<smem>>
    %341 = vector.broadcast %340 : f32 to vector<1x256xf32>
    %342 = arith.mulf %341, %328 : vector<1x256xf32>
    %c61 = arith.constant 61 : index
    %343 = memref.load %arg1[%c61] : memref<98xf32, #tpu.memory_space<smem>>
    %344 = vector.broadcast %343 : f32 to vector<1x256xf32>
    %345 = arith.mulf %344, %331 : vector<1x256xf32>
    %346 = arith.addf %342, %345 : vector<1x256xf32>
    %347 = arith.addf %285, %346 : vector<1x256xf32>
    %c19 = arith.constant 19 : index
    %348 = memref.load %arg1[%c19] : memref<98xf32, #tpu.memory_space<smem>>
    %349 = vector.broadcast %348 : f32 to vector<1x256xf32>
    %350 = arith.mulf %349, %328 : vector<1x256xf32>
    %c68 = arith.constant 68 : index
    %351 = memref.load %arg1[%c68] : memref<98xf32, #tpu.memory_space<smem>>
    %352 = vector.broadcast %351 : f32 to vector<1x256xf32>
    %353 = arith.mulf %352, %331 : vector<1x256xf32>
    %354 = arith.addf %350, %353 : vector<1x256xf32>
    %355 = arith.addf %293, %354 : vector<1x256xf32>
    %c26 = arith.constant 26 : index
    %356 = memref.load %arg1[%c26] : memref<98xf32, #tpu.memory_space<smem>>
    %357 = vector.broadcast %356 : f32 to vector<1x256xf32>
    %358 = arith.mulf %357, %328 : vector<1x256xf32>
    %c75 = arith.constant 75 : index
    %359 = memref.load %arg1[%c75] : memref<98xf32, #tpu.memory_space<smem>>
    %360 = vector.broadcast %359 : f32 to vector<1x256xf32>
    %361 = arith.mulf %360, %331 : vector<1x256xf32>
    %362 = arith.addf %358, %361 : vector<1x256xf32>
    %363 = arith.addf %301, %362 : vector<1x256xf32>
    %c33 = arith.constant 33 : index
    %364 = memref.load %arg1[%c33] : memref<98xf32, #tpu.memory_space<smem>>
    %365 = vector.broadcast %364 : f32 to vector<1x256xf32>
    %366 = arith.mulf %365, %328 : vector<1x256xf32>
    %c82 = arith.constant 82 : index
    %367 = memref.load %arg1[%c82] : memref<98xf32, #tpu.memory_space<smem>>
    %368 = vector.broadcast %367 : f32 to vector<1x256xf32>
    %369 = arith.mulf %368, %331 : vector<1x256xf32>
    %370 = arith.addf %366, %369 : vector<1x256xf32>
    %371 = arith.addf %309, %370 : vector<1x256xf32>
    %c40 = arith.constant 40 : index
    %372 = memref.load %arg1[%c40] : memref<98xf32, #tpu.memory_space<smem>>
    %373 = vector.broadcast %372 : f32 to vector<1x256xf32>
    %374 = arith.mulf %373, %328 : vector<1x256xf32>
    %c89 = arith.constant 89 : index
    %375 = memref.load %arg1[%c89] : memref<98xf32, #tpu.memory_space<smem>>
    %376 = vector.broadcast %375 : f32 to vector<1x256xf32>
    %377 = arith.mulf %376, %331 : vector<1x256xf32>
    %378 = arith.addf %374, %377 : vector<1x256xf32>
    %379 = arith.addf %317, %378 : vector<1x256xf32>
    %c47 = arith.constant 47 : index
    %380 = memref.load %arg1[%c47] : memref<98xf32, #tpu.memory_space<smem>>
    %381 = vector.broadcast %380 : f32 to vector<1x256xf32>
    %382 = arith.mulf %381, %328 : vector<1x256xf32>
    %c96 = arith.constant 96 : index
    %383 = memref.load %arg1[%c96] : memref<98xf32, #tpu.memory_space<smem>>
    %384 = vector.broadcast %383 : f32 to vector<1x256xf32>
    %385 = arith.mulf %384, %331 : vector<1x256xf32>
    %386 = arith.addf %382, %385 : vector<1x256xf32>
    %387 = arith.addf %325, %386 : vector<1x256xf32>
    %c253_i32 = arith.constant 253 : i32
    %388 = tpu.dynamic_rotate %1 by %c253_i32 dim 1 : vector<1x256xf32>, i32 -> vector<1x256xf32>
    %cst_32 = arith.constant 0.000000e+00 : f32
    %389 = vector.broadcast %cst_32 : f32 to vector<1x256xf32>
    %390 = arith.select %26, %388, %389 : vector<1x256xi1>, vector<1x256xf32>
    %c253_i32_33 = arith.constant 253 : i32
    %391 = tpu.dynamic_rotate %2 by %c253_i32_33 dim 1 : vector<1x256xf32>, i32 -> vector<1x256xf32>
    %cst_34 = arith.constant 0.000000e+00 : f32
    %392 = vector.broadcast %cst_34 : f32 to vector<1x256xf32>
    %393 = arith.select %26, %391, %392 : vector<1x256xi1>, vector<1x256xf32>
    %c6 = arith.constant 6 : index
    %394 = memref.load %arg1[%c6] : memref<98xf32, #tpu.memory_space<smem>>
    %395 = vector.broadcast %394 : f32 to vector<1x256xf32>
    %396 = arith.mulf %395, %390 : vector<1x256xf32>
    %c55 = arith.constant 55 : index
    %397 = memref.load %arg1[%c55] : memref<98xf32, #tpu.memory_space<smem>>
    %398 = vector.broadcast %397 : f32 to vector<1x256xf32>
    %399 = arith.mulf %398, %393 : vector<1x256xf32>
    %400 = arith.addf %396, %399 : vector<1x256xf32>
    %401 = arith.addf %339, %400 : vector<1x256xf32>
    %c13 = arith.constant 13 : index
    %402 = memref.load %arg1[%c13] : memref<98xf32, #tpu.memory_space<smem>>
    %403 = vector.broadcast %402 : f32 to vector<1x256xf32>
    %404 = arith.mulf %403, %390 : vector<1x256xf32>
    %c62 = arith.constant 62 : index
    %405 = memref.load %arg1[%c62] : memref<98xf32, #tpu.memory_space<smem>>
    %406 = vector.broadcast %405 : f32 to vector<1x256xf32>
    %407 = arith.mulf %406, %393 : vector<1x256xf32>
    %408 = arith.addf %404, %407 : vector<1x256xf32>
    %409 = arith.addf %347, %408 : vector<1x256xf32>
    %c20 = arith.constant 20 : index
    %410 = memref.load %arg1[%c20] : memref<98xf32, #tpu.memory_space<smem>>
    %411 = vector.broadcast %410 : f32 to vector<1x256xf32>
    %412 = arith.mulf %411, %390 : vector<1x256xf32>
    %c69 = arith.constant 69 : index
    %413 = memref.load %arg1[%c69] : memref<98xf32, #tpu.memory_space<smem>>
    %414 = vector.broadcast %413 : f32 to vector<1x256xf32>
    %415 = arith.mulf %414, %393 : vector<1x256xf32>
    %416 = arith.addf %412, %415 : vector<1x256xf32>
    %417 = arith.addf %355, %416 : vector<1x256xf32>
    %c27 = arith.constant 27 : index
    %418 = memref.load %arg1[%c27] : memref<98xf32, #tpu.memory_space<smem>>
    %419 = vector.broadcast %418 : f32 to vector<1x256xf32>
    %420 = arith.mulf %419, %390 : vector<1x256xf32>
    %c76 = arith.constant 76 : index
    %421 = memref.load %arg1[%c76] : memref<98xf32, #tpu.memory_space<smem>>
    %422 = vector.broadcast %421 : f32 to vector<1x256xf32>
    %423 = arith.mulf %422, %393 : vector<1x256xf32>
    %424 = arith.addf %420, %423 : vector<1x256xf32>
    %425 = arith.addf %363, %424 : vector<1x256xf32>
    %c34 = arith.constant 34 : index
    %426 = memref.load %arg1[%c34] : memref<98xf32, #tpu.memory_space<smem>>
    %427 = vector.broadcast %426 : f32 to vector<1x256xf32>
    %428 = arith.mulf %427, %390 : vector<1x256xf32>
    %c83 = arith.constant 83 : index
    %429 = memref.load %arg1[%c83] : memref<98xf32, #tpu.memory_space<smem>>
    %430 = vector.broadcast %429 : f32 to vector<1x256xf32>
    %431 = arith.mulf %430, %393 : vector<1x256xf32>
    %432 = arith.addf %428, %431 : vector<1x256xf32>
    %433 = arith.addf %371, %432 : vector<1x256xf32>
    %c41 = arith.constant 41 : index
    %434 = memref.load %arg1[%c41] : memref<98xf32, #tpu.memory_space<smem>>
    %435 = vector.broadcast %434 : f32 to vector<1x256xf32>
    %436 = arith.mulf %435, %390 : vector<1x256xf32>
    %c90 = arith.constant 90 : index
    %437 = memref.load %arg1[%c90] : memref<98xf32, #tpu.memory_space<smem>>
    %438 = vector.broadcast %437 : f32 to vector<1x256xf32>
    %439 = arith.mulf %438, %393 : vector<1x256xf32>
    %440 = arith.addf %436, %439 : vector<1x256xf32>
    %441 = arith.addf %379, %440 : vector<1x256xf32>
    %c48 = arith.constant 48 : index
    %442 = memref.load %arg1[%c48] : memref<98xf32, #tpu.memory_space<smem>>
    %443 = vector.broadcast %442 : f32 to vector<1x256xf32>
    %444 = arith.mulf %443, %390 : vector<1x256xf32>
    %c97 = arith.constant 97 : index
    %445 = memref.load %arg1[%c97] : memref<98xf32, #tpu.memory_space<smem>>
    %446 = vector.broadcast %445 : f32 to vector<1x256xf32>
    %447 = arith.mulf %446, %393 : vector<1x256xf32>
    %448 = arith.addf %444, %447 : vector<1x256xf32>
    %449 = arith.addf %387, %448 : vector<1x256xf32>
    %c0_35 = arith.constant 0 : index
    %450 = memref.load %arg2[%c0_35] : memref<1xf32, #tpu.memory_space<smem>>
    %451 = vector.broadcast %450 : f32 to vector<1x256xf32>
    %c48_i32 = arith.constant 48 : i32
    %452 = tpu.dynamic_rotate %401 by %c48_i32 dim 1 : vector<1x256xf32>, i32 -> vector<1x256xf32>
    %cst_36 = arith.constant 0.000000e+00 : f32
    %453 = vector.broadcast %cst_36 : f32 to vector<1x256xf32>
    %454 = arith.select %8, %452, %453 : vector<1x256xi1>, vector<1x256xf32>
    %455 = arith.addf %451, %454 : vector<1x256xf32>
    %c32_i32 = arith.constant 32 : i32
    %456 = tpu.dynamic_rotate %409 by %c32_i32 dim 1 : vector<1x256xf32>, i32 -> vector<1x256xf32>
    %cst_37 = arith.constant 0.000000e+00 : f32
    %457 = vector.broadcast %cst_37 : f32 to vector<1x256xf32>
    %458 = arith.select %12, %456, %457 : vector<1x256xi1>, vector<1x256xf32>
    %459 = arith.addf %455, %458 : vector<1x256xf32>
    %c16_i32 = arith.constant 16 : i32
    %460 = tpu.dynamic_rotate %417 by %c16_i32 dim 1 : vector<1x256xf32>, i32 -> vector<1x256xf32>
    %cst_38 = arith.constant 0.000000e+00 : f32
    %461 = vector.broadcast %cst_38 : f32 to vector<1x256xf32>
    %462 = arith.select %16, %460, %461 : vector<1x256xi1>, vector<1x256xf32>
    %463 = arith.addf %459, %462 : vector<1x256xf32>
    %464 = arith.addf %463, %425 : vector<1x256xf32>
    %c240_i32 = arith.constant 240 : i32
    %465 = tpu.dynamic_rotate %433 by %c240_i32 dim 1 : vector<1x256xf32>, i32 -> vector<1x256xf32>
    %cst_39 = arith.constant 0.000000e+00 : f32
    %466 = vector.broadcast %cst_39 : f32 to vector<1x256xf32>
    %467 = arith.select %20, %465, %466 : vector<1x256xi1>, vector<1x256xf32>
    %468 = arith.addf %464, %467 : vector<1x256xf32>
    %c224_i32 = arith.constant 224 : i32
    %469 = tpu.dynamic_rotate %441 by %c224_i32 dim 1 : vector<1x256xf32>, i32 -> vector<1x256xf32>
    %cst_40 = arith.constant 0.000000e+00 : f32
    %470 = vector.broadcast %cst_40 : f32 to vector<1x256xf32>
    %471 = arith.select %24, %469, %470 : vector<1x256xi1>, vector<1x256xf32>
    %472 = arith.addf %468, %471 : vector<1x256xf32>
    %c208_i32 = arith.constant 208 : i32
    %473 = tpu.dynamic_rotate %449 by %c208_i32 dim 1 : vector<1x256xf32>, i32 -> vector<1x256xf32>
    %cst_41 = arith.constant 0.000000e+00 : f32
    %474 = vector.broadcast %cst_41 : f32 to vector<1x256xf32>
    %475 = arith.select %28, %473, %474 : vector<1x256xi1>, vector<1x256xf32>
    %476 = arith.addf %472, %475 : vector<1x256xf32>
    %477 = arith.negf %476 : vector<1x256xf32>
    %478 = math.exp %477 : vector<1x256xf32>
    %cst_42 = arith.constant 1.000000e+00 : f32
    %479 = vector.broadcast %cst_42 : f32 to vector<1x256xf32>
    %480 = arith.addf %479, %478 : vector<1x256xf32>
    %481 = arith.divf %479, %480 : vector<1x256xf32>
    %482 = vector.shape_cast %481 : vector<1x256xf32> to vector<1x1x256xf32>
    %483 = vector.broadcast %482 : vector<1x1x256xf32> to vector<1x4x256xf32>
    %484 = arith.mulf %0, %483 : vector<1x4x256xf32>
    %c0_43 = arith.constant 0 : index
    %c0_44 = arith.constant 0 : index
    %c0_45 = arith.constant 0 : index
    %485 = vector.load %arg5[%c0_43, %c0_44, %c0_45] : memref<1x4x256xf32, #tpu.memory_space<vmem>>, vector<1x4x256xf32>
    tpu.vector_store %arg5[%c0_43, %c0_44, %c0_45], %484 {strides = array<i32>} : memref<1x4x256xf32, #tpu.memory_space<vmem>>, vector<1x4x256xf32>,
    return
  }
  func.func @transform_0(%arg0: i32) -> i32 {
    %c0_i32 = arith.constant 0 : i32
    %c0_i32_0 = arith.constant 0 : i32
    return %c0_i32 : i32
  }
  func.func @transform_1(%arg0: i32) -> i32 {
    %c0_i32 = arith.constant 0 : i32
    %c0_i32_0 = arith.constant 0 : i32
    return %c0_i32 : i32
  }
  func.func @transform_2(%arg0: i32) -> (i32, i32) {
    %c0_i32 = arith.constant 0 : i32
    %c0_i32_0 = arith.constant 0 : i32
    %c0_i32_1 = arith.constant 0 : i32
    return %c0_i32, %c0_i32_0 : i32, i32
  }
  func.func @transform_3(%arg0: i32) -> (i32, i32, i32) {
    %c0_i32 = arith.constant 0 : i32
    %c0_i32_0 = arith.constant 0 : i32
    %c0_i32_1 = arith.constant 0 : i32
    return %arg0, %c0_i32, %c0_i32_0 : i32, i32, i32
  }
  func.func @transform_4(%arg0: i32) -> (i32, i32, i32) {
    %c0_i32 = arith.constant 0 : i32
    %c0_i32_0 = arith.constant 0 : i32
    %c0_i32_1 = arith.constant 0 : i32
    return %arg0, %c0_i32, %c0_i32_0 : i32, i32, i32
  }
}

</mosaic_0001>

<llo_original>
// kernel: tpu_custom_call.1
$region0: #{tpu_custom_call.1}
  #allocation0 [shape = 'u32[]', space=smem, size = 0x4, offset = 0x4, fixed_abs, tag = 'smem constant byte address 0x4 - core index']
  #allocation1 [shape = 'u32[144,128]{1,0:T(1,128)}', space=vmem, size = 0x12000, scoped, tag = 'internal scratch']
  #allocation2 [shape = 'f32[1]{0:T(128)S(6)}', space=smem, size = 0x200, scoped, tag = 'scoped memory for tpu_custom_call.1']
  %s0 = inlined_call_operand.vmem [shape: f32[98], index: 0, kind: input, shape index: {}]
  %s1 = inlined_call_operand.<no memory space> [shape: f32[1], index: 1, kind: input, shape index: {}]
  %s2 = inlined_call_operand.vmem [shape: s32[2,256], index: 2, kind: input, shape index: {}]
  %s3 = inlined_call_operand.hbm [shape: f32[2,4,256], index: 3, kind: input, shape index: {}]
  %s4 = inlined_call_operand.hbm [shape: f32[2,4,256], index: 4, kind: output, shape index: {}]
  %s5 = sld [smem:[#allocation0]]
  $region57: #{tpu_custom_call.1} parent=0
    _
  %s7 = ssub.s32 1, %s5
  %s8 = scalar_select 0, %s7, %s5
  %9 = sst [smem:[#allocation2]] %s1
  $region1: #{tpu_custom_call.1} parent=0
    #allocation3 [shape = 'u8[512]{0}', space=smem, size = 0x200, scoped, tag = 'input window, operand 0, single buffered']
    #allocation4 [shape = 's32[2]{0}', space=sflag, size = 0x8, scoped, tag = 'scoped memory for tpu_custom_call.1']
    #allocation5 [shape = 's32[2]{0}', space=sflag, size = 0x8, scoped, tag = 'scoped memory for tpu_custom_call.1']
    #allocation6 [shape = 's32[2]{0}', space=sflag, size = 0x8, scoped, tag = 'scoped memory for tpu_custom_call.1']
    #allocation7 [shape = 'u8[8192]{0}', space=vmem, size = 0x2000, scoped, tag = 'input window, operand 3']
    #allocation8 [shape = 'u8[8192]{0}', space=vmem, size = 0x2000, scoped, tag = 'output window, operand 0']
    %10 = vsyncpa [#allocation6], 0
    %11 = vsyncpa [#allocation4], 0
    %s12 = scalar_lea.sflag [#allocation4], 1
    %13 = vsyncpa %s12, 0
    %14 = vsyncpa [#allocation5], 0
    %s15 = scalar_lea.sflag [#allocation5], 1
    %16 = vsyncpa %s15, 0
    loop: start=0, step=1, limit=4
    $region2: #{tpu_custom_call.1} parent=1 // loop_pre_header
      _
    $region3: #{tpu_custom_call.1} parent=1 // loop_header
      %s18 = sphi 0, %s22
      %p19 = scmp.ge.s32.totalorder %s18, 4
      %s26 = sphi 0, %s26
      %s28 = sphi 0, %s26
      %s29 = sphi 0, %s28
      %s43 = sphi 0, %s29
      %s47 = sphi 0, %s47
      %s49 = sphi 0, %s47
      %s50 = sphi 0, %s49
      %s64 = sphi 0, %s50
      %s68 = sphi 0, %s68
      %s70 = sphi 0, %s68
      %s71 = sphi 0, %s70
      %s85 = sphi 0, %s71
      %s91 = sphi 0, %s93
      %s94 = sphi 0, %s91
      %s95 = sphi 0, %s94
      %s111 = sphi 0, %s95
      %s117 = sphi 0, %s119
      %s120 = sphi 0, %s117
      %s121 = sphi 0, %s120
      %s137 = sphi 0, %s121
    $region4: #{tpu_custom_call.1} parent=1 // loop_header_branch
      %21 = sbr.rel (%p19) target = $region8
    $region5: #{tpu_custom_call.1} parent=1 // loop_body
      %s23 = ssub.s32 %s18, 1
      %s24 = ssub.s32 %s18, 2
      %s25 = sadd.s32 %s18, 1
      %s27 = sadd.s32 %s26, 1
      %p30 = scmp.eq.s32.totalorder %s18, 1
      %p31 = scmp.ne.s32.totalorder %s26, %s28
      %p32 = scmp.eq.s32.totalorder %s18, 0
      %p33 = por %p31, %p32
      %p34 = scmp.ne.s32.totalorder %s26, %s28
      %p35 = scmp.eq.s32.totalorder %s23, 1
      %p36 = por %p34, %p35
      %p37 = scmp.ne.s32.totalorder %s28, %s29
      %p38 = scmp.eq.s32.totalorder %s23, 0
      %p39 = por %p37, %p38
      %p40 = scmp.ne.s32.totalorder %s28, %s29
      %p41 = scmp.eq.s32.totalorder %s24, 1
      %p42 = por %p40, %p41
      %p44 = scmp.ne.s32.totalorder %s29, %s43
      %p45 = scmp.eq.s32.totalorder %s24, 0
      %p46 = por %p44, %p45
      %s48 = sadd.s32 %s47, 1
      %p51 = scmp.eq.s32.totalorder %s18, 1
      %p52 = scmp.ne.s32.totalorder %s47, %s49
      %p53 = scmp.eq.s32.totalorder %s18, 0
      %p54 = por %p52, %p53
      %p55 = scmp.ne.s32.totalorder %s47, %s49
      %p56 = scmp.eq.s32.totalorder %s23, 1
      %p57 = por %p55, %p56
      %p58 = scmp.ne.s32.totalorder %s49, %s50
      %p59 = scmp.eq.s32.totalorder %s23, 0
      %p60 = por %p58, %p59
      %p61 = scmp.ne.s32.totalorder %s49, %s50
      %p62 = scmp.eq.s32.totalorder %s24, 1
      %p63 = por %p61, %p62
      %p65 = scmp.ne.s32.totalorder %s50, %s64
      %p66 = scmp.eq.s32.totalorder %s24, 0
      %p67 = por %p65, %p66
      %s69 = sadd.s32 %s68, 1
      %p72 = scmp.eq.s32.totalorder %s18, 1
      %p73 = scmp.ne.s32.totalorder %s68, %s70
      %p74 = scmp.eq.s32.totalorder %s18, 0
      %p75 = por %p73, %p74
      %p76 = scmp.ne.s32.totalorder %s68, %s70
      %p77 = scmp.eq.s32.totalorder %s23, 1
      %p78 = por %p76, %p77
      %p79 = scmp.ne.s32.totalorder %s70, %s71
      %p80 = scmp.eq.s32.totalorder %s23, 0
      %p81 = por %p79, %p80
      %p82 = scmp.ne.s32.totalorder %s70, %s71
      %p83 = scmp.eq.s32.totalorder %s24, 1
      %p84 = por %p82, %p83
      %p86 = scmp.ne.s32.totalorder %s71, %s85
      %p87 = scmp.eq.s32.totalorder %s24, 0
      %p88 = por %p86, %p87
      %s89 = ssub.s32 %s18, %s25
      %p90 = scmp.eq.s32.totalorder %s89, 0
      %s92 = sadd.s32 %s91, 1
      %s93 = scalar_select %p90, %s91, %s92
      %p96 = pneg %p90
      %p97 = scmp.eq.s32.totalorder %s18, 1
      %p98 = por %p96, %p97
      %p99 = scmp.ne.s32.totalorder %s91, %s94
      %p100 = scmp.eq.s32.totalorder %s18, 0
      %p101 = por %p99, %p100
      %p102 = scmp.ne.s32.totalorder %s91, %s94
      %p103 = scmp.eq.s32.totalorder %s23, 1
      %p104 = por %p102, %p103
      %p105 = scmp.ne.s32.totalorder %s94, %s95
      %p106 = scmp.eq.s32.totalorder %s23, 0
      %p107 = por %p105, %p106
      %p108 = scmp.ne.s32.totalorder %s94, %s95
      %p109 = scmp.eq.s32.totalorder %s24, 1
      %p110 = por %p108, %p109
      %p112 = scmp.ne.s32.totalorder %s95, %s111
      %p113 = scmp.eq.s32.totalorder %s24, 0
      %p114 = por %p112, %p113
      %s115 = ssub.s32 %s18, %s25
      %p116 = scmp.eq.s32.totalorder %s115, 0
      %s118 = sadd.s32 %s117, 1
      %s119 = scalar_select %p116, %s117, %s118
      %p122 = pneg %p116
      %p123 = scmp.eq.s32.totalorder %s18, 1
      %p124 = por %p122, %p123
      %p125 = scmp.ne.s32.totalorder %s117, %s120
      %p126 = scmp.eq.s32.totalorder %s18, 0
      %p127 = por %p125, %p126
      %p128 = scmp.ne.s32.totalorder %s117, %s120
      %p129 = scmp.eq.s32.totalorder %s23, 1
      %p130 = por %p128, %p129
      %p131 = scmp.ne.s32.totalorder %s120, %s121
      %p132 = scmp.eq.s32.totalorder %s23, 0
      %p133 = por %p131, %p132
      %p134 = scmp.ne.s32.totalorder %s120, %s121
      %p135 = scmp.eq.s32.totalorder %s24, 1
      %p136 = por %p134, %p135
      %p138 = scmp.ne.s32.totalorder %s121, %s137
      %p139 = scmp.eq.s32.totalorder %s24, 0
      %p140 = por %p138, %p139
      %p141 = scmp.le.s32.totalorder 1, %s18
      %p142 = scmp.lt.s32.totalorder %s18, 3
      %p143 = pnand %p141, %p142
      %p144 = pneg %p143
      // Predicated region
      $region9: #{tpu_custom_call.1} parent=5 // pred_check
        _
      $region10: #{tpu_custom_call.1} parent=5 // pred_check_branch
        %146 = sbr.rel (%p143) target = $region12
      $region11: #{tpu_custom_call.1} parent=5 // pred_region
        %s147 = ssub.s32 %s18, 1
        // Predicated region
        $region13: #{tpu_custom_call.1} parent=11 // pred_check
          %p148 = pneg %p39
        $region14: #{tpu_custom_call.1} parent=11 // pred_check_branch
          %150 = sbr.rel (%p148) target = $region16
        $region15: #{tpu_custom_call.1} parent=11 // pred_region
          %s152 = ssub.s32 16, 16
          %153 = vsyncadd [#allocation6], %s152
          %s155 = sshll.u32 %s0, 4
          %s156 = int_to_ptr.vmem [resolvable:$true] %s155
          %158 = dma.vmem_to_smem %s156, 16, [#allocation3], [#allocation6]
        $region16: #{tpu_custom_call.1} parent=11 // pred_fallthru
          _
        // Predicated region
        $region17: #{tpu_custom_call.1} parent=11 // pred_check
          %p159 = pneg %p60
        $region18: #{tpu_custom_call.1} parent=11 // pred_check_branch
          %161 = sbr.rel (%p159) target = $region20
        $region19: #{tpu_custom_call.1} parent=11 // pred_region
          _
        $region20: #{tpu_custom_call.1} parent=11 // pred_fallthru
          _
        // Predicated region
        $region21: #{tpu_custom_call.1} parent=11 // pred_check
          %p162 = pneg %p81
        $region22: #{tpu_custom_call.1} parent=11 // pred_check_branch
          %164 = sbr.rel (%p162) target = $region24
        $region23: #{tpu_custom_call.1} parent=11 // pred_region
          _
        $region24: #{tpu_custom_call.1} parent=11 // pred_fallthru
          _
      $region12: #{tpu_custom_call.1} parent=5 // pred_fallthru
        _
      %p165 = scmp.lt.s32.totalorder %s18, 2
      // Predicated region
      $region25: #{tpu_custom_call.1} parent=5 // pred_check
        %p166 = pneg %p165
      $region26: #{tpu_custom_call.1} parent=5 // pred_check_branch
        %168 = sbr.rel (%p166) target = $region28
      $region27: #{tpu_custom_call.1} parent=5 // pred_region
        // Predicated region
        $region29: #{tpu_custom_call.1} parent=27 // pred_check
          %p169 = pneg %p101
        $region30: #{tpu_custom_call.1} parent=27 // pred_check_branch
          %171 = sbr.rel (%p169) target = $region32
        $region31: #{tpu_custom_call.1} parent=27 // pred_region
          %s172 = sand.u32 %s91, 1
          %s173 = scalar_lea.sflag [#allocation4], %s172
          %s174 = sand.u32 %s91, 1
          %s175 = smul.addr %s174, 8
          %s176 = scalar_lea.vmem [#allocation7], %s175
          %s178 = ssub.s32 128, 128
          %179 = vsyncadd %s173, %s178
          %s180 = smul.addr %s18, 2
          %s181 = smul.addr %s180, 64
          %s182 = scalar_lea.hbm %s3, %s181
          %s184 = sshll.u32 %s176, 4
          %s185 = int_to_ptr.vmem [resolvable:$true] %s184
          %187 = dma.hbm_to_vmem [thread:$0]  %s182, 128, %s185, %s173
        $region32: #{tpu_custom_call.1} parent=27 // pred_fallthru
          _
      $region28: #{tpu_custom_call.1} parent=5 // pred_fallthru
        _
      %p188 = scmp.le.s32.totalorder 1, %s18
      %p189 = scmp.lt.s32.totalorder %s18, 3
      %p190 = pnand %p188, %p189
      %p191 = pneg %p190
      // Predicated region
      $region33: #{tpu_custom_call.1} parent=5 // pred_check
        _
      $region34: #{tpu_custom_call.1} parent=5 // pred_check_branch
        %193 = sbr.rel (%p190) target = $region36
      $region35: #{tpu_custom_call.1} parent=5 // pred_region
        %s194 = ssub.s32 %s18, 1
        // Predicated region
        $region37: #{tpu_custom_call.1} parent=35 // pred_check
          %p195 = pneg %p39
        $region38: #{tpu_custom_call.1} parent=35 // pred_check_branch
          %197 = sbr.rel (%p195) target = $region40
        $region39: #{tpu_custom_call.1} parent=35 // pred_region
          %198 = dma.done [#allocation6], 16
        $region40: #{tpu_custom_call.1} parent=35 // pred_fallthru
          _
        %s199 = sand.u32 %s94, 1
        %s200 = scalar_lea.sflag [#allocation4], %s199
        %s201 = sand.u32 %s94, 1
        %s202 = smul.addr %s201, 8
        %s203 = scalar_lea.vmem [#allocation7], %s202
        // Predicated region
        $region41: #{tpu_custom_call.1} parent=35 // pred_check
          %p204 = pneg %p107
        $region42: #{tpu_custom_call.1} parent=35 // pred_check_branch
          %206 = sbr.rel (%p204) target = $region44
        $region43: #{tpu_custom_call.1} parent=35 // pred_region
          %207 = dma.done %s200, 128
        $region44: #{tpu_custom_call.1} parent=35 // pred_fallthru
          _
        %208 = sfence
        %p209 = pneg %p39
        %p210 = pneg %p36
        %p211 = pneg %p60
        %p212 = pneg %p57
        %p213 = pneg %p81
        %p214 = pneg %p78
        %s215 = sand.u32 %s94, 1
        %s216 = scalar_lea.sflag [#allocation4], %s215
        %s217 = sand.u32 %s94, 1
        %s218 = smul.addr %s217, 8
        %s219 = scalar_lea.vmem [#allocation7], %s218
        %p220 = pneg %p107
        %p221 = pneg %p104
        %p222 = pneg %p133
        %p223 = pneg %p130
        %s224 = sand.u32 %s120, 1
        %s225 = scalar_lea.sflag [#allocation5], %s224
        %s226 = sand.u32 %s120, 1
        %s227 = smul.addr %s226, 8
        %s228 = scalar_lea.vmem [#allocation8], %s227
        %v229 = vld [vmem:[%s203] sm:$0xff]
        %v231 = vcombine.high %v229, %v229
        %vm233 = vcmask 1043456
        %v234 = vsel %vm233, %v229, 0.0
        %v235 = vrot.slane %v234, 4
        %v236 = vadd.f32 %v234, %v235
        %v237 = vrot.slane %v236, 2
        %v238 = vadd.f32 %v236, %v237
        %v239 = vrot.slane %v238, 1
        %v240 = vadd.f32 %v238, %v239
        %v241 = vsel %vm233, %v231, 0.0
        %v242 = vrot.slane %v241, 4
        %v243 = vadd.f32 %v241, %v242
        %v244 = vrot.slane %v243, 2
        %v245 = vadd.f32 %v243, %v244
        %v246 = vrot.slane %v245, 1
        %v247 = vadd.f32 %v245, %v246
        %v248 = vsel %vm233, %v229, -inf
        %v249 = vrot.slane %v248, 4
        %v250 = vmax.f32 %v248, %v249
        %v251 = vrot.slane %v250, 2
        %v252 = vmax.f32 %v250, %v251
        %v253 = vrot.slane %v252, 1
        %v254 = vmax.f32 %v252, %v253
        %v255 = vsel %vm233, %v231, -inf
        %v256 = vrot.slane %v255, 4
        %v257 = vmax.f32 %v255, %v256
        %v258 = vrot.slane %v257, 2
        %v259 = vmax.f32 %v257, %v258
        %v260 = vrot.slane %v259, 1
        %v261 = vmax.f32 %v259, %v260
        %v262 = vld [vmem:[%s2] ss:$2 sm:$0x3]
        %s263 = scalar_lea.vmem %s2, 1
        %v264 = vld [vmem:[%s263] ss:$2 sm:$0x3]
        %vm265 = vcmp.ge.s32.totalorder %v264, 3
        %vm266 = vcmp.ge.s32.totalorder %v262, 3
        %vm267 = vcmp.ge.s32.totalorder %v264, 2
        %vm268 = vcmp.ge.s32.totalorder %v262, 2
        %vm269 = vcmp.ge.s32.totalorder %v264, 1
        %vm270 = vcmp.ge.s32.totalorder %v262, 1
        %vm271 = vcmp.lt.s32.totalorder %v264, 15
        %vm272 = vcmp.lt.s32.totalorder %v262, 15
        %vm273 = vcmp.lt.s32.totalorder %v264, 14
        %vm274 = vcmp.lt.s32.totalorder %v262, 14
        %vm275 = vcmp.lt.s32.totalorder %v264, 13
        %vm276 = vcmp.lt.s32.totalorder %v262, 13
        %277 = vrot.lane.b32.xlu0 %v240, 3
        %v278 = vpop.permute.xlu0 %277
        %279 = vrot.lane.b32.xlu0 %v247, 3
        %v280 = vpop.permute.xlu0 %279
        %v281 = vlaneseq
        %v282 = vand.u32 %v281, 127
        %vm283 = vcmp.lt.s32.totalorder %v282, 3
        %v284 = vsel %vm283, %v278, %v280
        %v285 = vsel %vm283, %v280, %v278
        %v288 = vcombine.low %v285, %v284
        %v290 = vunpack.c.l.s4 1966171168
        %v291 = vunpack.c.0.s8 %v290
        %v292 = vlaneseq
        %v293 = vshrl.u32 %v292, 7
        %v294 = vsub.s32 %v291, %v293
        %v295 = vrot.slane %v288, %v294
        %v297 = vunpack.c.l.s4 1966171168
        %v298 = vunpack.c.0.s8 %v297
        %v299 = vlaneseq
        %v300 = vshrl.u32 %v299, 7
        %v301 = vsub.s32 %v298, %v300
        %v302 = vrot.slane %v295, %v301
        %v304 = vsel %vm265, %v302, 0.0
        %305 = vrot.lane.b32.xlu0 %v254, 3
        %v306 = vpop.permute.xlu0 %305
        %307 = vrot.lane.b32.xlu0 %v261, 3
        %v308 = vpop.permute.xlu0 %307
        %v309 = vsel %vm283, %v306, %v308
        %v310 = vsel %vm283, %v308, %v306
        %v313 = vcombine.low %v310, %v309
        %v315 = vunpack.c.l.s4 1966171168
        %v316 = vunpack.c.0.s8 %v315
        %v317 = vlaneseq
        %v318 = vshrl.u32 %v317, 7
        %v319 = vsub.s32 %v316, %v318
        %v320 = vrot.slane %v313, %v319
        %v322 = vunpack.c.l.s4 1966171168
        %v323 = vunpack.c.0.s8 %v322
        %v324 = vlaneseq
        %v325 = vshrl.u32 %v324, 7
        %v326 = vsub.s32 %v323, %v325
        %v327 = vrot.slane %v320, %v326
        %v329 = vsel %vm265, %v327, 0.0
        %s330 = sld [smem:[#allocation3]]
        %v331 = vstv %s330
        %v332 = vmul.f32 %v331, %v304
        %s333 = sld [smem:[#allocation3 + $0x31]]
        %v334 = vstv %s333
        %v335 = vmul.f32 %v334, %v329
        %v336 = vadd.f32 %v332, %v335
        %s337 = sld [smem:[#allocation3 + $0x7]]
        %v338 = vstv %s337
        %v339 = vmul.f32 %v338, %v304
        %s340 = sld [smem:[#allocation3 + $0x38]]
        %v341 = vstv %s340
        %v342 = vmul.f32 %v341, %v329
        %v343 = vadd.f32 %v339, %v342
        %s344 = sld [smem:[#allocation3 + $0xe]]
        %v345 = vstv %s344
        %v346 = vmul.f32 %v345, %v304
        %s347 = sld [smem:[#allocation3 + $0x3f]]
        %v348 = vstv %s347
        %v349 = vmul.f32 %v348, %v329
        %v350 = vadd.f32 %v346, %v349
        %s351 = sld [smem:[#allocation3 + $0x15]]
        %v352 = vstv %s351
        %v353 = vmul.f32 %v352, %v304
        %s354 = sld [smem:[#allocation3 + $0x46]]
        %v355 = vstv %s354
        %v356 = vmul.f32 %v355, %v329
        %v357 = vadd.f32 %v353, %v356
        %s358 = sld [smem:[#allocation3 + $0x1c]]
        %v359 = vstv %s358
        %v360 = vmul.f32 %v359, %v304
        %s361 = sld [smem:[#allocation3 + $0x4d]]
        %v362 = vstv %s361
        %v363 = vmul.f32 %v362, %v329
        %v364 = vadd.f32 %v360, %v363
        %s365 = sld [smem:[#allocation3 + $0x23]]
        %v366 = vstv %s365
        %v367 = vmul.f32 %v366, %v304
        %s368 = sld [smem:[#allocation3 + $0x54]]
        %v369 = vstv %s368
        %v370 = vmul.f32 %v369, %v329
        %v371 = vadd.f32 %v367, %v370
        %s372 = sld [smem:[#allocation3 + $0x2a]]
        %v373 = vstv %s372
        %v374 = vmul.f32 %v373, %v304
        %s375 = sld [smem:[#allocation3 + $0x5b]]
        %v376 = vstv %s375
        %v377 = vmul.f32 %v376, %v329
        %v378 = vadd.f32 %v374, %v377
        %379 = vrot.lane.b32.xlu0 %v240, 2
        %v380 = vpop.permute.xlu0 %379
        %381 = vrot.lane.b32.xlu0 %v247, 2
        %v382 = vpop.permute.xlu0 %381
        %vm383 = vcmp.lt.s32.totalorder %v282, 2
        %v384 = vsel %vm383, %v380, %v382
        %v385 = vsel %vm383, %v382, %v380
        %v388 = vcombine.low %v385, %v384
        %v390 = vunpack.c.l.s4 1966171168
        %v391 = vunpack.c.0.s8 %v390
        %v392 = vlaneseq
        %v393 = vshrl.u32 %v392, 7
        %v394 = vsub.s32 %v391, %v393
        %v395 = vrot.slane %v388, %v394
        %v397 = vunpack.c.l.s4 1966171168
        %v398 = vunpack.c.0.s8 %v397
        %v399 = vlaneseq
        %v400 = vshrl.u32 %v399, 7
        %v401 = vsub.s32 %v398, %v400
        %v402 = vrot.slane %v395, %v401
        %v404 = vsel %vm267, %v402, 0.0
        %405 = vrot.lane.b32.xlu0 %v254, 2
        %v406 = vpop.permute.xlu0 %405
        %407 = vrot.lane.b32.xlu0 %v261, 2
        %v408 = vpop.permute.xlu0 %407
        %v409 = vsel %vm383, %v406, %v408
        %v410 = vsel %vm383, %v408, %v406
        %v413 = vcombine.low %v410, %v409
        %v415 = vunpack.c.l.s4 1966171168
        %v416 = vunpack.c.0.s8 %v415
        %v417 = vlaneseq
        %v418 = vshrl.u32 %v417, 7
        %v419 = vsub.s32 %v416, %v418
        %v420 = vrot.slane %v413, %v419
        %v422 = vunpack.c.l.s4 1966171168
        %v423 = vunpack.c.0.s8 %v422
        %v424 = vlaneseq
        %v425 = vshrl.u32 %v424, 7
        %v426 = vsub.s32 %v423, %v425
        %v427 = vrot.slane %v420, %v426
        %v429 = vsel %vm267, %v427, 0.0
        %s430 = sld [smem:[#allocation3 + $0x1]]
        %v431 = vstv %s430
        %v432 = vmul.f32 %v431, %v404
        %s433 = sld [smem:[#allocation3 + $0x32]]
        %v434 = vstv %s433
        %v435 = vmul.f32 %v434, %v429
        %v436 = vadd.f32 %v432, %v435
        %v437 = vadd.f32 %v336, %v436
        %s438 = sld [smem:[#allocation3 + $0x8]]
        %v439 = vstv %s438
        %v440 = vmul.f32 %v439, %v404
        %s441 = sld [smem:[#allocation3 + $0x39]]
        %v442 = vstv %s441
        %v443 = vmul.f32 %v442, %v429
        %v444 = vadd.f32 %v440, %v443
        %v445 = vadd.f32 %v343, %v444
        %s446 = sld [smem:[#allocation3 + $0xf]]
        %v447 = vstv %s446
        %v448 = vmul.f32 %v447, %v404
        %s449 = sld [smem:[#allocation3 + $0x40]]
        %v450 = vstv %s449
        %v451 = vmul.f32 %v450, %v429
        %v452 = vadd.f32 %v448, %v451
        %v453 = vadd.f32 %v350, %v452
        %s454 = sld [smem:[#allocation3 + $0x16]]
        %v455 = vstv %s454
        %v456 = vmul.f32 %v455, %v404
        %s457 = sld [smem:[#allocation3 + $0x47]]
        %v458 = vstv %s457
        %v459 = vmul.f32 %v458, %v429
        %v460 = vadd.f32 %v456, %v459
        %v461 = vadd.f32 %v357, %v460
        %s462 = sld [smem:[#allocation3 + $0x1d]]
        %v463 = vstv %s462
        %v464 = vmul.f32 %v463, %v404
        %s465 = sld [smem:[#allocation3 + $0x4e]]
        %v466 = vstv %s465
        %v467 = vmul.f32 %v466, %v429
        %v468 = vadd.f32 %v464, %v467
        %v469 = vadd.f32 %v364, %v468
        %s470 = sld [smem:[#allocation3 + $0x24]]
        %v471 = vstv %s470
        %v472 = vmul.f32 %v471, %v404
        %s473 = sld [smem:[#allocation3 + $0x55]]
        %v474 = vstv %s473
        %v475 = vmul.f32 %v474, %v429
        %v476 = vadd.f32 %v472, %v475
        %v477 = vadd.f32 %v371, %v476
        %s478 = sld [smem:[#allocation3 + $0x2b]]
        %v479 = vstv %s478
        %v480 = vmul.f32 %v479, %v404
        %s481 = sld [smem:[#allocation3 + $0x5c]]
        %v482 = vstv %s481
        %v483 = vmul.f32 %v482, %v429
        %v484 = vadd.f32 %v480, %v483
        %v485 = vadd.f32 %v378, %v484
        %486 = vrot.lane.b32.xlu0 %v240, 1
        %v487 = vpop.permute.xlu0 %486
        %488 = vrot.lane.b32.xlu0 %v247, 1
        %v489 = vpop.permute.xlu0 %488
        %vm490 = vcmp.lt.s32.totalorder %v282, 1
        %v491 = vsel %vm490, %v487, %v489
        %v492 = vsel %vm490, %v489, %v487
        %v495 = vcombine.low %v492, %v491
        %v497 = vunpack.c.l.s4 1966171168
        %v498 = vunpack.c.0.s8 %v497
        %v499 = vlaneseq
        %v500 = vshrl.u32 %v499, 7
        %v501 = vsub.s32 %v498, %v500
        %v502 = vrot.slane %v495, %v501
        %v504 = vunpack.c.l.s4 1966171168
        %v505 = vunpack.c.0.s8 %v504
        %v506 = vlaneseq
        %v507 = vshrl.u32 %v506, 7
        %v508 = vsub.s32 %v505, %v507
        %v509 = vrot.slane %v502, %v508
        %v511 = vsel %vm269, %v509, 0.0
        %512 = vrot.lane.b32.xlu0 %v254, 1
        %v513 = vpop.permute.xlu0 %512
        %514 = vrot.lane.b32.xlu0 %v261, 1
        %v515 = vpop.permute.xlu0 %514
        %v516 = vsel %vm490, %v513, %v515
        %v517 = vsel %vm490, %v515, %v513
        %v520 = vcombine.low %v517, %v516
        %v522 = vunpack.c.l.s4 1966171168
        %v523 = vunpack.c.0.s8 %v522
        %v524 = vlaneseq
        %v525 = vshrl.u32 %v524, 7
        %v526 = vsub.s32 %v523, %v525
        %v527 = vrot.slane %v520, %v526
        %v529 = vunpack.c.l.s4 1966171168
        %v530 = vunpack.c.0.s8 %v529
        %v531 = vlaneseq
        %v532 = vshrl.u32 %v531, 7
        %v533 = vsub.s32 %v530, %v532
        %v534 = vrot.slane %v527, %v533
        %v536 = vsel %vm269, %v534, 0.0
        %s537 = sld [smem:[#allocation3 + $0x2]]
        %v538 = vstv %s537
        %v539 = vmul.f32 %v538, %v511
        %s540 = sld [smem:[#allocation3 + $0x33]]
        %v541 = vstv %s540
        %v542 = vmul.f32 %v541, %v536
        %v543 = vadd.f32 %v539, %v542
        %v544 = vadd.f32 %v437, %v543
        %s545 = sld [smem:[#allocation3 + $0x9]]
        %v546 = vstv %s545
        %v547 = vmul.f32 %v546, %v511
        %s548 = sld [smem:[#allocation3 + $0x3a]]
        %v549 = vstv %s548
        %v550 = vmul.f32 %v549, %v536
        %v551 = vadd.f32 %v547, %v550
        %v552 = vadd.f32 %v445, %v551
        %s553 = sld [smem:[#allocation3 + $0x10]]
        %v554 = vstv %s553
        %v555 = vmul.f32 %v554, %v511
        %s556 = sld [smem:[#allocation3 + $0x41]]
        %v557 = vstv %s556
        %v558 = vmul.f32 %v557, %v536
        %v559 = vadd.f32 %v555, %v558
        %v560 = vadd.f32 %v453, %v559
        %s561 = sld [smem:[#allocation3 + $0x17]]
        %v562 = vstv %s561
        %v563 = vmul.f32 %v562, %v511
        %s564 = sld [smem:[#allocation3 + $0x48]]
        %v565 = vstv %s564
        %v566 = vmul.f32 %v565, %v536
        %v567 = vadd.f32 %v563, %v566
        %v568 = vadd.f32 %v461, %v567
        %s569 = sld [smem:[#allocation3 + $0x1e]]
        %v570 = vstv %s569
        %v571 = vmul.f32 %v570, %v511
        %s572 = sld [smem:[#allocation3 + $0x4f]]
        %v573 = vstv %s572
        %v574 = vmul.f32 %v573, %v536
        %v575 = vadd.f32 %v571, %v574
        %v576 = vadd.f32 %v469, %v575
        %s577 = sld [smem:[#allocation3 + $0x25]]
        %v578 = vstv %s577
        %v579 = vmul.f32 %v578, %v511
        %s580 = sld [smem:[#allocation3 + $0x56]]
        %v581 = vstv %s580
        %v582 = vmul.f32 %v581, %v536
        %v583 = vadd.f32 %v579, %v582
        %v584 = vadd.f32 %v477, %v583
        %s585 = sld [smem:[#allocation3 + $0x2c]]
        %v586 = vstv %s585
        %v587 = vmul.f32 %v586, %v511
        %s588 = sld [smem:[#allocation3 + $0x5d]]
        %v589 = vstv %s588
        %v590 = vmul.f32 %v589, %v536
        %v591 = vadd.f32 %v587, %v590
        %v592 = vadd.f32 %v485, %v591
        %s593 = sld [smem:[#allocation3 + $0x3]]
        %v594 = vstv %s593
        %v595 = vmul.f32 %v594, %v240
        %v596 = vmul.f32 %v594, %v247
        %s597 = sld [smem:[#allocation3 + $0x34]]
        %v598 = vstv %s597
        %v599 = vmul.f32 %v598, %v254
        %v600 = vmul.f32 %v598, %v261
        %v601 = vadd.f32 %v595, %v599
        %v602 = vadd.f32 %v596, %v600
        %v605 = vcombine.low %v601, %v602
        %v607 = vunpack.c.l.s4 1966171168
        %v608 = vunpack.c.0.s8 %v607
        %v609 = vlaneseq
        %v610 = vshrl.u32 %v609, 7
        %v611 = vsub.s32 %v608, %v610
        %v612 = vrot.slane %v605, %v611
        %v614 = vunpack.c.l.s4 1966171168
        %v615 = vunpack.c.0.s8 %v614
        %v616 = vlaneseq
        %v617 = vshrl.u32 %v616, 7
        %v618 = vsub.s32 %v615, %v617
        %v619 = vrot.slane %v612, %v618
        %v621 = vadd.f32 %v544, %v619
        %s622 = sld [smem:[#allocation3 + $0xa]]
        %v623 = vstv %s622
        %v624 = vmul.f32 %v623, %v240
        %v625 = vmul.f32 %v623, %v247
        %s626 = sld [smem:[#allocation3 + $0x3b]]
        %v627 = vstv %s626
        %v628 = vmul.f32 %v627, %v254
        %v629 = vmul.f32 %v627, %v261
        %v630 = vadd.f32 %v624, %v628
        %v631 = vadd.f32 %v625, %v629
        %v634 = vcombine.low %v630, %v631
        %v636 = vunpack.c.l.s4 1966171168
        %v637 = vunpack.c.0.s8 %v636
        %v638 = vlaneseq
        %v639 = vshrl.u32 %v638, 7
        %v640 = vsub.s32 %v637, %v639
        %v641 = vrot.slane %v634, %v640
        %v643 = vunpack.c.l.s4 1966171168
        %v644 = vunpack.c.0.s8 %v643
        %v645 = vlaneseq
        %v646 = vshrl.u32 %v645, 7
        %v647 = vsub.s32 %v644, %v646
        %v648 = vrot.slane %v641, %v647
        %v650 = vadd.f32 %v552, %v648
        %s651 = sld [smem:[#allocation3 + $0x11]]
        %v652 = vstv %s651
        %v653 = vmul.f32 %v652, %v240
        %v654 = vmul.f32 %v652, %v247
        %s655 = sld [smem:[#allocation3 + $0x42]]
        %v656 = vstv %s655
        %v657 = vmul.f32 %v656, %v254
        %v658 = vmul.f32 %v656, %v261
        %v659 = vadd.f32 %v653, %v657
        %v660 = vadd.f32 %v654, %v658
        %v663 = vcombine.low %v659, %v660
        %v665 = vunpack.c.l.s4 1966171168
        %v666 = vunpack.c.0.s8 %v665
        %v667 = vlaneseq
        %v668 = vshrl.u32 %v667, 7
        %v669 = vsub.s32 %v666, %v668
        %v670 = vrot.slane %v663, %v669
        %v672 = vunpack.c.l.s4 1966171168
        %v673 = vunpack.c.0.s8 %v672
        %v674 = vlaneseq
        %v675 = vshrl.u32 %v674, 7
        %v676 = vsub.s32 %v673, %v675
        %v677 = vrot.slane %v670, %v676
        %v679 = vadd.f32 %v560, %v677
        %s680 = sld [smem:[#allocation3 + $0x18]]
        %v681 = vstv %s680
        %v682 = vmul.f32 %v681, %v240
        %v683 = vmul.f32 %v681, %v247
        %s684 = sld [smem:[#allocation3 + $0x49]]
        %v685 = vstv %s684
        %v686 = vmul.f32 %v685, %v254
        %v687 = vmul.f32 %v685, %v261
        %v688 = vadd.f32 %v682, %v686
        %v689 = vadd.f32 %v683, %v687
        %v692 = vcombine.low %v688, %v689
        %v694 = vunpack.c.l.s4 1966171168
        %v695 = vunpack.c.0.s8 %v694
        %v696 = vlaneseq
        %v697 = vshrl.u32 %v696, 7
        %v698 = vsub.s32 %v695, %v697
        %v699 = vrot.slane %v692, %v698
        %v701 = vunpack.c.l.s4 1966171168
        %v702 = vunpack.c.0.s8 %v701
        %v703 = vlaneseq
        %v704 = vshrl.u32 %v703, 7
        %v705 = vsub.s32 %v702, %v704
        %v706 = vrot.slane %v699, %v705
        %v708 = vadd.f32 %v568, %v706
        %s709 = sld [smem:[#allocation3 + $0x1f]]
        %v710 = vstv %s709
        %v711 = vmul.f32 %v710, %v240
        %v712 = vmul.f32 %v710, %v247
        %s713 = sld [smem:[#allocation3 + $0x50]]
        %v714 = vstv %s713
        %v715 = vmul.f32 %v714, %v254
        %v716 = vmul.f32 %v714, %v261
        %v717 = vadd.f32 %v711, %v715
        %v718 = vadd.f32 %v712, %v716
        %v721 = vcombine.low %v717, %v718
        %v723 = vunpack.c.l.s4 1966171168
        %v724 = vunpack.c.0.s8 %v723
        %v725 = vlaneseq
        %v726 = vshrl.u32 %v725, 7
        %v727 = vsub.s32 %v724, %v726
        %v728 = vrot.slane %v721, %v727
        %v730 = vunpack.c.l.s4 1966171168
        %v731 = vunpack.c.0.s8 %v730
        %v732 = vlaneseq
        %v733 = vshrl.u32 %v732, 7
        %v734 = vsub.s32 %v731, %v733
        %v735 = vrot.slane %v728, %v734
        %v737 = vadd.f32 %v576, %v735
        %s738 = sld [smem:[#allocation3 + $0x26]]
        %v739 = vstv %s738
        %v740 = vmul.f32 %v739, %v240
        %v741 = vmul.f32 %v739, %v247
        %s742 = sld [smem:[#allocation3 + $0x57]]
        %v743 = vstv %s742
        %v744 = vmul.f32 %v743, %v254
        %v745 = vmul.f32 %v743, %v261
        %v746 = vadd.f32 %v740, %v744
        %v747 = vadd.f32 %v741, %v745
        %v750 = vcombine.low %v746, %v747
        %v752 = vunpack.c.l.s4 1966171168
        %v753 = vunpack.c.0.s8 %v752
        %v754 = vlaneseq
        %v755 = vshrl.u32 %v754, 7
        %v756 = vsub.s32 %v753, %v755
        %v757 = vrot.slane %v750, %v756
        %v759 = vunpack.c.l.s4 1966171168
        %v760 = vunpack.c.0.s8 %v759
        %v761 = vlaneseq
        %v762 = vshrl.u32 %v761, 7
        %v763 = vsub.s32 %v760, %v762
        %v764 = vrot.slane %v757, %v763
        %v766 = vadd.f32 %v584, %v764
        %s767 = sld [smem:[#allocation3 + $0x2d]]
        %v768 = vstv %s767
        %v769 = vmul.f32 %v768, %v240
        %v770 = vmul.f32 %v768, %v247
        %s771 = sld [smem:[#allocation3 + $0x5e]]
        %v772 = vstv %s771
        %v773 = vmul.f32 %v772, %v254
        %v774 = vmul.f32 %v772, %v261
        %v775 = vadd.f32 %v769, %v773
        %v776 = vadd.f32 %v770, %v774
        %v779 = vcombine.low %v775, %v776
        %v781 = vunpack.c.l.s4 1966171168
        %v782 = vunpack.c.0.s8 %v781
        %v783 = vlaneseq
        %v784 = vshrl.u32 %v783, 7
        %v785 = vsub.s32 %v782, %v784
        %v786 = vrot.slane %v779, %v785
        %v788 = vunpack.c.l.s4 1966171168
        %v789 = vunpack.c.0.s8 %v788
        %v790 = vlaneseq
        %v791 = vshrl.u32 %v790, 7
        %v792 = vsub.s32 %v789, %v791
        %v793 = vrot.slane %v786, %v792
        %v795 = vadd.f32 %v592, %v793
        %796 = vrot.lane.b32.xlu0 %v240, 127
        %v797 = vpop.permute.xlu0 %796
        %798 = vrot.lane.b32.xlu0 %v247, 127
        %v799 = vpop.permute.xlu0 %798
        %vm800 = vcmp.lt.s32.totalorder %v282, 127
        %v801 = vsel %vm800, %v797, %v799
        %v802 = vsel %vm800, %v799, %v797
        %v805 = vcombine.low %v801, %v802
        %v807 = vunpack.c.l.s4 1966171168
        %v808 = vunpack.c.0.s8 %v807
        %v809 = vlaneseq
        %v810 = vshrl.u32 %v809, 7
        %v811 = vsub.s32 %v808, %v810
        %v812 = vrot.slane %v805, %v811
        %v814 = vunpack.c.l.s4 1966171168
        %v815 = vunpack.c.0.s8 %v814
        %v816 = vlaneseq
        %v817 = vshrl.u32 %v816, 7
        %v818 = vsub.s32 %v815, %v817
        %v819 = vrot.slane %v812, %v818
        %v821 = vsel %vm271, %v819, 0.0
        %822 = vrot.lane.b32.xlu0 %v254, 127
        %v823 = vpop.permute.xlu0 %822
        %824 = vrot.lane.b32.xlu0 %v261, 127
        %v825 = vpop.permute.xlu0 %824
        %v826 = vsel %vm800, %v823, %v825
        %v827 = vsel %vm800, %v825, %v823
        %v830 = vcombine.low %v826, %v827
        %v832 = vunpack.c.l.s4 1966171168
        %v833 = vunpack.c.0.s8 %v832
        %v834 = vlaneseq
        %v835 = vshrl.u32 %v834, 7
        %v836 = vsub.s32 %v833, %v835
        %v837 = vrot.slane %v830, %v836
        %v839 = vunpack.c.l.s4 1966171168
        %v840 = vunpack.c.0.s8 %v839
        %v841 = vlaneseq
        %v842 = vshrl.u32 %v841, 7
        %v843 = vsub.s32 %v840, %v842
        %v844 = vrot.slane %v837, %v843
        %v846 = vsel %vm271, %v844, 0.0
        %s847 = sld [smem:[#allocation3 + $0x4]]
        %v848 = vstv %s847
        %v849 = vmul.f32 %v848, %v821
        %s850 = sld [smem:[#allocation3 + $0x35]]
        %v851 = vstv %s850
        %v852 = vmul.f32 %v851, %v846
        %v853 = vadd.f32 %v849, %v852
        %v854 = vadd.f32 %v621, %v853
        %s855 = sld [smem:[#allocation3 + $0xb]]
        %v856 = vstv %s855
        %v857 = vmul.f32 %v856, %v821
        %s858 = sld [smem:[#allocation3 + $0x3c]]
        %v859 = vstv %s858
        %v860 = vmul.f32 %v859, %v846
        %v861 = vadd.f32 %v857, %v860
        %v862 = vadd.f32 %v650, %v861
        %s863 = sld [smem:[#allocation3 + $0x12]]
        %v864 = vstv %s863
        %v865 = vmul.f32 %v864, %v821
        %s866 = sld [smem:[#allocation3 + $0x43]]
        %v867 = vstv %s866
        %v868 = vmul.f32 %v867, %v846
        %v869 = vadd.f32 %v865, %v868
        %v870 = vadd.f32 %v679, %v869
        %s871 = sld [smem:[#allocation3 + $0x19]]
        %v872 = vstv %s871
        %v873 = vmul.f32 %v872, %v821
        %s874 = sld [smem:[#allocation3 + $0x4a]]
        %v875 = vstv %s874
        %v876 = vmul.f32 %v875, %v846
        %v877 = vadd.f32 %v873, %v876
        %v878 = vadd.f32 %v708, %v877
        %s879 = sld [smem:[#allocation3 + $0x20]]
        %v880 = vstv %s879
        %v881 = vmul.f32 %v880, %v821
        %s882 = sld [smem:[#allocation3 + $0x51]]
        %v883 = vstv %s882
        %v884 = vmul.f32 %v883, %v846
        %v885 = vadd.f32 %v881, %v884
        %v886 = vadd.f32 %v737, %v885
        %s887 = sld [smem:[#allocation3 + $0x27]]
        %v888 = vstv %s887
        %v889 = vmul.f32 %v888, %v821
        %s890 = sld [smem:[#allocation3 + $0x58]]
        %v891 = vstv %s890
        %v892 = vmul.f32 %v891, %v846
        %v893 = vadd.f32 %v889, %v892
        %v894 = vadd.f32 %v766, %v893
        %s895 = sld [smem:[#allocation3 + $0x2e]]
        %v896 = vstv %s895
        %v897 = vmul.f32 %v896, %v821
        %s898 = sld [smem:[#allocation3 + $0x5f]]
        %v899 = vstv %s898
        %v900 = vmul.f32 %v899, %v846
        %v901 = vadd.f32 %v897, %v900
        %v902 = vadd.f32 %v795, %v901
        %903 = vrot.lane.b32.xlu0 %v240, 126
        %v904 = vpop.permute.xlu0 %903
        %905 = vrot.lane.b32.xlu0 %v247, 126
        %v906 = vpop.permute.xlu0 %905
        %vm907 = vcmp.lt.s32.totalorder %v282, 126
        %v908 = vsel %vm907, %v904, %v906
        %v909 = vsel %vm907, %v906, %v904
        %v912 = vcombine.low %v908, %v909
        %v914 = vunpack.c.l.s4 1966171168
        %v915 = vunpack.c.0.s8 %v914
        %v916 = vlaneseq
        %v917 = vshrl.u32 %v916, 7
        %v918 = vsub.s32 %v915, %v917
        %v919 = vrot.slane %v912, %v918
        %v921 = vunpack.c.l.s4 1966171168
        %v922 = vunpack.c.0.s8 %v921
        %v923 = vlaneseq
        %v924 = vshrl.u32 %v923, 7
        %v925 = vsub.s32 %v922, %v924
        %v926 = vrot.slane %v919, %v925
        %v928 = vsel %vm273, %v926, 0.0
        %929 = vrot.lane.b32.xlu0 %v254, 126
        %v930 = vpop.permute.xlu0 %929
        %931 = vrot.lane.b32.xlu0 %v261, 126
        %v932 = vpop.permute.xlu0 %931
        %v933 = vsel %vm907, %v930, %v932
        %v934 = vsel %vm907, %v932, %v930
        %v937 = vcombine.low %v933, %v934
        %v939 = vunpack.c.l.s4 1966171168
        %v940 = vunpack.c.0.s8 %v939
        %v941 = vlaneseq
        %v942 = vshrl.u32 %v941, 7
        %v943 = vsub.s32 %v940, %v942
        %v944 = vrot.slane %v937, %v943
        %v946 = vunpack.c.l.s4 1966171168
        %v947 = vunpack.c.0.s8 %v946
        %v948 = vlaneseq
        %v949 = vshrl.u32 %v948, 7
        %v950 = vsub.s32 %v947, %v949
        %v951 = vrot.slane %v944, %v950
        %v953 = vsel %vm273, %v951, 0.0
        %s954 = sld [smem:[#allocation3 + $0x5]]
        %v955 = vstv %s954
        %v956 = vmul.f32 %v955, %v928
        %s957 = sld [smem:[#allocation3 + $0x36]]
        %v958 = vstv %s957
        %v959 = vmul.f32 %v958, %v953
        %v960 = vadd.f32 %v956, %v959
        %v961 = vadd.f32 %v854, %v960
        %s962 = sld [smem:[#allocation3 + $0xc]]
        %v963 = vstv %s962
        %v964 = vmul.f32 %v963, %v928
        %s965 = sld [smem:[#allocation3 + $0x3d]]
        %v966 = vstv %s965
        %v967 = vmul.f32 %v966, %v953
        %v968 = vadd.f32 %v964, %v967
        %v969 = vadd.f32 %v862, %v968
        %s970 = sld [smem:[#allocation3 + $0x13]]
        %v971 = vstv %s970
        %v972 = vmul.f32 %v971, %v928
        %s973 = sld [smem:[#allocation3 + $0x44]]
        %v974 = vstv %s973
        %v975 = vmul.f32 %v974, %v953
        %v976 = vadd.f32 %v972, %v975
        %v977 = vadd.f32 %v870, %v976
        %s978 = sld [smem:[#allocation3 + $0x1a]]
        %v979 = vstv %s978
        %v980 = vmul.f32 %v979, %v928
        %s981 = sld [smem:[#allocation3 + $0x4b]]
        %v982 = vstv %s981
        %v983 = vmul.f32 %v982, %v953
        %v984 = vadd.f32 %v980, %v983
        %v985 = vadd.f32 %v878, %v984
        %s986 = sld [smem:[#allocation3 + $0x21]]
        %v987 = vstv %s986
        %v988 = vmul.f32 %v987, %v928
        %s989 = sld [smem:[#allocation3 + $0x52]]
        %v990 = vstv %s989
        %v991 = vmul.f32 %v990, %v953
        %v992 = vadd.f32 %v988, %v991
        %v993 = vadd.f32 %v886, %v992
        %s994 = sld [smem:[#allocation3 + $0x28]]
        %v995 = vstv %s994
        %v996 = vmul.f32 %v995, %v928
        %s997 = sld [smem:[#allocation3 + $0x59]]
        %v998 = vstv %s997
        %v999 = vmul.f32 %v998, %v953
        %v1000 = vadd.f32 %v996, %v999
        %v1001 = vadd.f32 %v894, %v1000
        %s1002 = sld [smem:[#allocation3 + $0x2f]]
        %v1003 = vstv %s1002
        %v1004 = vmul.f32 %v1003, %v928
        %s1005 = sld [smem:[#allocation3 + $0x60]]
        %v1006 = vstv %s1005
        %v1007 = vmul.f32 %v1006, %v953
        %v1008 = vadd.f32 %v1004, %v1007
        %v1009 = vadd.f32 %v902, %v1008
        %1010 = vrot.lane.b32.xlu0 %v240, 125
        %v1011 = vpop.permute.xlu0 %1010
        %1012 = vrot.lane.b32.xlu0 %v247, 125
        %v1013 = vpop.permute.xlu0 %1012
        %vm1014 = vcmp.lt.s32.totalorder %v282, 125
        %v1015 = vsel %vm1014, %v1011, %v1013
        %v1016 = vsel %vm1014, %v1013, %v1011
        %v1019 = vcombine.low %v1015, %v1016
        %v1021 = vunpack.c.l.s4 1966171168
        %v1022 = vunpack.c.0.s8 %v1021
        %v1023 = vlaneseq
        %v1024 = vshrl.u32 %v1023, 7
        %v1025 = vsub.s32 %v1022, %v1024
        %v1026 = vrot.slane %v1019, %v1025
        %v1028 = vunpack.c.l.s4 1966171168
        %v1029 = vunpack.c.0.s8 %v1028
        %v1030 = vlaneseq
        %v1031 = vshrl.u32 %v1030, 7
        %v1032 = vsub.s32 %v1029, %v1031
        %v1033 = vrot.slane %v1026, %v1032
        %v1035 = vsel %vm275, %v1033, 0.0
        %1036 = vrot.lane.b32.xlu0 %v254, 125
        %v1037 = vpop.permute.xlu0 %1036
        %1038 = vrot.lane.b32.xlu0 %v261, 125
        %v1039 = vpop.permute.xlu0 %1038
        %v1040 = vsel %vm1014, %v1037, %v1039
        %v1041 = vsel %vm1014, %v1039, %v1037
        %v1044 = vcombine.low %v1040, %v1041
        %v1046 = vunpack.c.l.s4 1966171168
        %v1047 = vunpack.c.0.s8 %v1046
        %v1048 = vlaneseq
        %v1049 = vshrl.u32 %v1048, 7
        %v1050 = vsub.s32 %v1047, %v1049
        %v1051 = vrot.slane %v1044, %v1050
        %v1053 = vunpack.c.l.s4 1966171168
        %v1054 = vunpack.c.0.s8 %v1053
        %v1055 = vlaneseq
        %v1056 = vshrl.u32 %v1055, 7
        %v1057 = vsub.s32 %v1054, %v1056
        %v1058 = vrot.slane %v1051, %v1057
        %v1060 = vsel %vm275, %v1058, 0.0
        %s1061 = sld [smem:[#allocation3 + $0x6]]
        %v1062 = vstv %s1061
        %v1063 = vmul.f32 %v1062, %v1035
        %s1064 = sld [smem:[#allocation3 + $0x37]]
        %v1065 = vstv %s1064
        %v1066 = vmul.f32 %v1065, %v1060
        %v1067 = vadd.f32 %v1063, %v1066
        %v1068 = vadd.f32 %v961, %v1067
        %s1069 = sld [smem:[#allocation3 + $0xd]]
        %v1070 = vstv %s1069
        %v1071 = vmul.f32 %v1070, %v1035
        %s1072 = sld [smem:[#allocation3 + $0x3e]]
        %v1073 = vstv %s1072
        %v1074 = vmul.f32 %v1073, %v1060
        %v1075 = vadd.f32 %v1071, %v1074
        %v1076 = vadd.f32 %v969, %v1075
        %s1077 = sld [smem:[#allocation3 + $0x14]]
        %v1078 = vstv %s1077
        %v1079 = vmul.f32 %v1078, %v1035
        %s1080 = sld [smem:[#allocation3 + $0x45]]
        %v1081 = vstv %s1080
        %v1082 = vmul.f32 %v1081, %v1060
        %v1083 = vadd.f32 %v1079, %v1082
        %v1084 = vadd.f32 %v977, %v1083
        %s1085 = sld [smem:[#allocation3 + $0x1b]]
        %v1086 = vstv %s1085
        %v1087 = vmul.f32 %v1086, %v1035
        %s1088 = sld [smem:[#allocation3 + $0x4c]]
        %v1089 = vstv %s1088
        %v1090 = vmul.f32 %v1089, %v1060
        %v1091 = vadd.f32 %v1087, %v1090
        %v1092 = vadd.f32 %v985, %v1091
        %s1093 = sld [smem:[#allocation3 + $0x22]]
        %v1094 = vstv %s1093
        %v1095 = vmul.f32 %v1094, %v1035
        %s1096 = sld [smem:[#allocation3 + $0x53]]
        %v1097 = vstv %s1096
        %v1098 = vmul.f32 %v1097, %v1060
        %v1099 = vadd.f32 %v1095, %v1098
        %v1100 = vadd.f32 %v993, %v1099
        %s1101 = sld [smem:[#allocation3 + $0x29]]
        %v1102 = vstv %s1101
        %v1103 = vmul.f32 %v1102, %v1035
        %s1104 = sld [smem:[#allocation3 + $0x5a]]
        %v1105 = vstv %s1104
        %v1106 = vmul.f32 %v1105, %v1060
        %v1107 = vadd.f32 %v1103, %v1106
        %v1108 = vadd.f32 %v1001, %v1107
        %s1109 = sld [smem:[#allocation3 + $0x30]]
        %v1110 = vstv %s1109
        %v1111 = vmul.f32 %v1110, %v1035
        %s1112 = sld [smem:[#allocation3 + $0x61]]
        %v1113 = vstv %s1112
        %v1114 = vmul.f32 %v1113, %v1060
        %v1115 = vadd.f32 %v1111, %v1114
        %v1116 = vadd.f32 %v1009, %v1115
        %s1117 = sld [smem:[#allocation2]]
        %v1118 = vstv %s1117
        %v1120 = vlaneseq
        %v1121 = vshrl.u32 %v1120, 7
        %v1122 = vsub.s32 0, %v1121
        %v1123 = vrot.slane %v1068, %v1122
        %v1124 = vlaneseq
        %v1125 = vshrl.u32 %v1124, 7
        %v1126 = vsub.s32 1, %v1125
        %v1127 = vrot.slane %v1068, %v1126
        %1130 = vrot.lane.b32.xlu0 %v1123, 48
        %v1131 = vpop.permute.xlu0 %1130
        %1132 = vrot.lane.b32.xlu0 %v1127, 48
        %v1133 = vpop.permute.xlu0 %1132
        %vm1134 = vcmp.lt.s32.totalorder %v282, 48
        %v1135 = vsel %vm1134, %v1131, %v1133
        %v1136 = vsel %vm1134, %v1133, %v1131
        %v1139 = vcombine.low %v1136, %v1135
        %v1141 = vunpack.c.l.s4 1966171168
        %v1142 = vunpack.c.0.s8 %v1141
        %v1143 = vlaneseq
        %v1144 = vshrl.u32 %v1143, 7
        %v1145 = vsub.s32 %v1142, %v1144
        %v1146 = vrot.slane %v1139, %v1145
        %v1148 = vunpack.c.l.s4 1966171168
        %v1149 = vunpack.c.0.s8 %v1148
        %v1150 = vlaneseq
        %v1151 = vshrl.u32 %v1150, 7
        %v1152 = vsub.s32 %v1149, %v1151
        %v1153 = vrot.slane %v1146, %v1152
        %v1155 = vsel %vm266, %v1153, 0.0
        %v1156 = vadd.f32 %v1118, %v1155
        %v1158 = vlaneseq
        %v1159 = vshrl.u32 %v1158, 7
        %v1160 = vsub.s32 0, %v1159
        %v1161 = vrot.slane %v1076, %v1160
        %v1162 = vlaneseq
        %v1163 = vshrl.u32 %v1162, 7
        %v1164 = vsub.s32 1, %v1163
        %v1165 = vrot.slane %v1076, %v1164
        %1168 = vrot.lane.b32.xlu0 %v1161, 32
        %v1169 = vpop.permute.xlu0 %1168
        %1170 = vrot.lane.b32.xlu0 %v1165, 32
        %v1171 = vpop.permute.xlu0 %1170
        %vm1172 = vcmp.lt.s32.totalorder %v282, 32
        %v1173 = vsel %vm1172, %v1169, %v1171
        %v1174 = vsel %vm1172, %v1171, %v1169
        %v1177 = vcombine.low %v1174, %v1173
        %v1179 = vunpack.c.l.s4 1966171168
        %v1180 = vunpack.c.0.s8 %v1179
        %v1181 = vlaneseq
        %v1182 = vshrl.u32 %v1181, 7
        %v1183 = vsub.s32 %v1180, %v1182
        %v1184 = vrot.slane %v1177, %v1183
        %v1186 = vunpack.c.l.s4 1966171168
        %v1187 = vunpack.c.0.s8 %v1186
        %v1188 = vlaneseq
        %v1189 = vshrl.u32 %v1188, 7
        %v1190 = vsub.s32 %v1187, %v1189
        %v1191 = vrot.slane %v1184, %v1190
        %v1193 = vsel %vm268, %v1191, 0.0
        %v1194 = vadd.f32 %v1156, %v1193
        %v1196 = vlaneseq
        %v1197 = vshrl.u32 %v1196, 7
        %v1198 = vsub.s32 0, %v1197
        %v1199 = vrot.slane %v1084, %v1198
        %v1200 = vlaneseq
        %v1201 = vshrl.u32 %v1200, 7
        %v1202 = vsub.s32 1, %v1201
        %v1203 = vrot.slane %v1084, %v1202
        %1206 = vrot.lane.b32.xlu0 %v1199, 16
        %v1207 = vpop.permute.xlu0 %1206
        %1208 = vrot.lane.b32.xlu0 %v1203, 16
        %v1209 = vpop.permute.xlu0 %1208
        %vm1210 = vcmp.lt.s32.totalorder %v282, 16
        %v1211 = vsel %vm1210, %v1207, %v1209
        %v1212 = vsel %vm1210, %v1209, %v1207
        %v1215 = vcombine.low %v1212, %v1211
        %v1217 = vunpack.c.l.s4 1966171168
        %v1218 = vunpack.c.0.s8 %v1217
        %v1219 = vlaneseq
        %v1220 = vshrl.u32 %v1219, 7
        %v1221 = vsub.s32 %v1218, %v1220
        %v1222 = vrot.slane %v1215, %v1221
        %v1224 = vunpack.c.l.s4 1966171168
        %v1225 = vunpack.c.0.s8 %v1224
        %v1226 = vlaneseq
        %v1227 = vshrl.u32 %v1226, 7
        %v1228 = vsub.s32 %v1225, %v1227
        %v1229 = vrot.slane %v1222, %v1228
        %v1231 = vsel %vm270, %v1229, 0.0
        %v1232 = vadd.f32 %v1194, %v1231
        %v1233 = vadd.f32 %v1232, %v1092
        %v1235 = vlaneseq
        %v1236 = vshrl.u32 %v1235, 7
        %v1237 = vsub.s32 0, %v1236
        %v1238 = vrot.slane %v1100, %v1237
        %v1239 = vlaneseq
        %v1240 = vshrl.u32 %v1239, 7
        %v1241 = vsub.s32 1, %v1240
        %v1242 = vrot.slane %v1100, %v1241
        %1245 = vrot.lane.b32.xlu0 %v1238, 112
        %v1246 = vpop.permute.xlu0 %1245
        %1247 = vrot.lane.b32.xlu0 %v1242, 112
        %v1248 = vpop.permute.xlu0 %1247
        %vm1249 = vcmp.lt.s32.totalorder %v282, 112
        %v1250 = vsel %vm1249, %v1246, %v1248
        %v1251 = vsel %vm1249, %v1248, %v1246
        %v1254 = vcombine.low %v1250, %v1251
        %v1256 = vunpack.c.l.s4 1966171168
        %v1257 = vunpack.c.0.s8 %v1256
        %v1258 = vlaneseq
        %v1259 = vshrl.u32 %v1258, 7
        %v1260 = vsub.s32 %v1257, %v1259
        %v1261 = vrot.slane %v1254, %v1260
        %v1263 = vunpack.c.l.s4 1966171168
        %v1264 = vunpack.c.0.s8 %v1263
        %v1265 = vlaneseq
        %v1266 = vshrl.u32 %v1265, 7
        %v1267 = vsub.s32 %v1264, %v1266
        %v1268 = vrot.slane %v1261, %v1267
        %v1270 = vsel %vm272, %v1268, 0.0
        %v1271 = vadd.f32 %v1233, %v1270
        %v1273 = vlaneseq
        %v1274 = vshrl.u32 %v1273, 7
        %v1275 = vsub.s32 0, %v1274
        %v1276 = vrot.slane %v1108, %v1275
        %v1277 = vlaneseq
        %v1278 = vshrl.u32 %v1277, 7
        %v1279 = vsub.s32 1, %v1278
        %v1280 = vrot.slane %v1108, %v1279
        %1283 = vrot.lane.b32.xlu0 %v1276, 96
        %v1284 = vpop.permute.xlu0 %1283
        %1285 = vrot.lane.b32.xlu0 %v1280, 96
        %v1286 = vpop.permute.xlu0 %1285
        %vm1287 = vcmp.lt.s32.totalorder %v282, 96
        %v1288 = vsel %vm1287, %v1284, %v1286
        %v1289 = vsel %vm1287, %v1286, %v1284
        %v1292 = vcombine.low %v1288, %v1289
        %v1294 = vunpack.c.l.s4 1966171168
        %v1295 = vunpack.c.0.s8 %v1294
        %v1296 = vlaneseq
        %v1297 = vshrl.u32 %v1296, 7
        %v1298 = vsub.s32 %v1295, %v1297
        %v1299 = vrot.slane %v1292, %v1298
        %v1301 = vunpack.c.l.s4 1966171168
        %v1302 = vunpack.c.0.s8 %v1301
        %v1303 = vlaneseq
        %v1304 = vshrl.u32 %v1303, 7
        %v1305 = vsub.s32 %v1302, %v1304
        %v1306 = vrot.slane %v1299, %v1305
        %v1308 = vsel %vm274, %v1306, 0.0
        %v1309 = vadd.f32 %v1271, %v1308
        %v1311 = vlaneseq
        %v1312 = vshrl.u32 %v1311, 7
        %v1313 = vsub.s32 0, %v1312
        %v1314 = vrot.slane %v1116, %v1313
        %v1315 = vlaneseq
        %v1316 = vshrl.u32 %v1315, 7
        %v1317 = vsub.s32 1, %v1316
        %v1318 = vrot.slane %v1116, %v1317
        %1321 = vrot.lane.b32.xlu0 %v1314, 80
        %v1322 = vpop.permute.xlu0 %1321
        %1323 = vrot.lane.b32.xlu0 %v1318, 80
        %v1324 = vpop.permute.xlu0 %1323
        %vm1325 = vcmp.lt.s32.totalorder %v282, 80
        %v1326 = vsel %vm1325, %v1322, %v1324
        %v1327 = vsel %vm1325, %v1324, %v1322
        %v1330 = vcombine.low %v1326, %v1327
        %v1332 = vunpack.c.l.s4 1966171168
        %v1333 = vunpack.c.0.s8 %v1332
        %v1334 = vlaneseq
        %v1335 = vshrl.u32 %v1334, 7
        %v1336 = vsub.s32 %v1333, %v1335
        %v1337 = vrot.slane %v1330, %v1336
        %v1339 = vunpack.c.l.s4 1966171168
        %v1340 = vunpack.c.0.s8 %v1339
        %v1341 = vlaneseq
        %v1342 = vshrl.u32 %v1341, 7
        %v1343 = vsub.s32 %v1340, %v1342
        %v1344 = vrot.slane %v1337, %v1343
        %v1346 = vsel %vm276, %v1344, 0.0
        %v1347 = vadd.f32 %v1309, %v1346
        %v1348 = vxor.u32 %v1347, 2147483648
        %v1349 = vmul.f32 %v1348, 1.442695
        %v1350 = vpow.pop %v1349
        %v1351 = vadd.f32 %v1350, 1.0
        %v1352 = vrcp.pop %v1351
        %v1353 = vmul.f32 1.0, %v1352
        %v1355 = vlaneseq
        %v1356 = vshrl.u32 %v1355, 7
        %v1357 = vsub.s32 0, %v1356
        %v1358 = vrot.slane %v1353, %v1357
        %v1359 = vlaneseq
        %v1360 = vshrl.u32 %v1359, 7
        %v1361 = vsub.s32 1, %v1360
        %v1362 = vrot.slane %v1353, %v1361
        %v1363 = vcombine.low %v1358, %v1362
        %v1365 = vmul.f32 %v229, %v1363
        %1366 = vst [vmem:[%s228] sm:$0xff] %v1365
        %s1367 = sand.u32 %s120, 1
        %s1368 = scalar_lea.sflag [#allocation5], %s1367
        %s1369 = sand.u32 %s120, 1
        %s1370 = smul.addr %s1369, 8
        %s1371 = scalar_lea.vmem [#allocation8], %s1370
        // Predicated region
        $region45: #{tpu_custom_call.1} parent=35 // pred_check
          %p1372 = pneg %p130
        $region46: #{tpu_custom_call.1} parent=35 // pred_check_branch
          %1374 = sbr.rel (%p1372) target = $region48
        $region47: #{tpu_custom_call.1} parent=35 // pred_region
          %s1376 = ssub.s32 128, 128
          %1377 = vsyncadd %s1368, %s1376
          %s1378 = smul.addr %s23, 2
          %s1379 = smul.addr %s1378, 64
          %s1380 = scalar_lea.hbm %s4, %s1379
          %s1382 = sshll.u32 %s1371, 4
          %s1383 = int_to_ptr.vmem [resolvable:$true] %s1382
          %1385 = dma.vmem_to_hbm [thread:$0]  %s1383, 128, %s1380, %s1368
        $region48: #{tpu_custom_call.1} parent=35 // pred_fallthru
          _
      $region36: #{tpu_custom_call.1} parent=5 // pred_fallthru
        _
      %p1386 = scmp.le.s32.totalorder 2, %s18
      // Predicated region
      $region49: #{tpu_custom_call.1} parent=5 // pred_check
        %p1387 = pneg %p1386
      $region50: #{tpu_custom_call.1} parent=5 // pred_check_branch
        %1389 = sbr.rel (%p1387) target = $region52
      $region51: #{tpu_custom_call.1} parent=5 // pred_region
        %s1390 = ssub.s32 %s18, 2
        // Predicated region
        $region53: #{tpu_custom_call.1} parent=51 // pred_check
          %p1391 = pneg %p136
        $region54: #{tpu_custom_call.1} parent=51 // pred_check_branch
          %1393 = sbr.rel (%p1391) target = $region56
        $region55: #{tpu_custom_call.1} parent=51 // pred_region
          %s1394 = sand.u32 %s121, 1
          %s1395 = scalar_lea.sflag [#allocation5], %s1394
          %s1396 = sand.u32 %s121, 1
          %s1397 = smul.addr %s1396, 8
          %s1398 = scalar_lea.vmem [#allocation8], %s1397
          %1399 = dma.done %s1395, 128
        $region56: #{tpu_custom_call.1} parent=51 // pred_fallthru
          _
      $region52: #{tpu_custom_call.1} parent=5 // pred_fallthru
        _
    $region6: #{tpu_custom_call.1} parent=1 // loop_footer
      %s22 = sadd.s32 1, %s18
    $region7: #{tpu_custom_call.1} parent=1 // loop_footer_branch
      %17 = sbr.rel target = $region3
    $region8: #{tpu_custom_call.1} parent=1 // loop_exit
      _
    %1400 = vsyncpa [#allocation4], 1
    %s1401 = scalar_lea.sflag [#allocation4], 1
    %1402 = vsyncpa %s1401, 1
    %1403 = vsyncpa [#allocation5], 1
    %s1404 = scalar_lea.sflag [#allocation5], 1
    %1405 = vsyncpa %s1404, 1
    %1406 = vsyncpa [#allocation6], 1
    %s1407 = scalar_lea.sflag [#allocation6], 1
    %1408 = vsyncpa %s1407, 1

</llo_original>
